<compile_context>
chip_gen: v7x
topology: tpu7x:2x2x1
jax: 0.10.0
libtpu: 0.0.40
codegen_flags: <defaults>
</compile_context>

<pallas_src>
import math

import jax
import jax.numpy as jnp
from jax.experimental import pallas as pl
from jax.experimental.pallas import tpu as pltpu


def _round_up(x, m):
    return ((x + m - 1) // m) * m


def _pad2d(a, rows, cols):
    out = jnp.zeros((rows, cols), a.dtype)
    return out.at[: a.shape[0], : a.shape[1]].set(a)


# --------------------------------------------------------------------------- kernel ---
def gin_layer_kernel(adj_ref, h_ref, w1_ref, b1_ref, w2_ref, b2_ref, out_ref, acc_ref):
    """Grid = (node row blocks, source/reduction blocks).

    For row block i:
        agg_i  = sum_k  (A + I)[i, k] @ h[k]          (f32 accumulation in VMEM scratch)
        out_i  = relu(agg_i @ W1 + b1) @ W2 + b2       (executed on the last k step)
    """
    k = pl.program_id(1)

    @pl.when(k == 0)
    def _init():
        acc_ref[...] = jnp.zeros_like(acc_ref)

    # Aggregation matmul on the MXU. Adjacency is stored bf16 (exact small integers);
    # features stay f32, accumulation in f32.
    acc_ref[...] += jnp.dot(
        adj_ref[...].astype(jnp.float32), h_ref[...], preferred_element_type=jnp.float32
    )

    @pl.when(k == pl.num_programs(1) - 1)
    def _finalize():
        z = acc_ref[...]
        hmid = jnp.dot(z, w1_ref[...], preferred_element_type=jnp.float32) + b1_ref[...]
        hmid = jnp.maximum(hmid, 0.0)  # ReLU (dropout / bn are Identity in this config)
        out_ref[...] = (
            jnp.dot(hmid, w2_ref[...], preferred_element_type=jnp.float32) + b2_ref[...]
        )


def gin_layer(adj_bf16, h, w1, b1, w2, b2, *, tm, tk):
    """One GIN layer on padded operands. adj_bf16:[Np,Np], h:[Np,Fp], w1:[Fp,Hp], ..."""
    n_pad, f_in = h.shape
    hid = w1.shape[1]
    out_dim = w2.shape[1]
    assert n_pad % tm == 0 and n_pad % tk == 0
    grid = (n_pad // tm, n_pad // tk)

    # Advisory cost estimate (aggregation dominates).
    flops = 2 * n_pad * n_pad * f_in + 2 * n_pad * f_in * hid + 2 * n_pad * hid * out_dim
    bytes_accessed = (
        n_pad * n_pad * 2                      # bf16 adjacency, streamed once
        + (n_pad // tm) * n_pad * f_in * 4     # h source blocks re-read per row block
        + (f_in * hid + hid * out_dim + hid + out_dim) * 4
        + n_pad * out_dim * 4                  # output
    )

    # VMEM budget: double-buffered streaming tiles + pinned weights + scratch, with margin.
    vmem_est = (
        2 * tm * tk * 2                        # adj tiles (bf16)
        + 2 * tk * f_in * 4                    # h tiles
        + 2 * (f_in * hid + hid * out_dim + hid + out_dim) * 4
        + 2 * tm * out_dim * 4                 # output tile
        + tm * f_in * 4                        # accumulator scratch
    )
    vmem_limit = int(min(max(2 * vmem_est + (8 << 20), 32 << 20), 48 << 20))

    return pl.pallas_call(
        gin_layer_kernel,
        out_shape=jax.ShapeDtypeStruct((n_pad, out_dim), jnp.float32),
        grid_spec=pltpu.PrefetchScalarGridSpec(
            num_scalar_prefetch=0,
            grid=grid,
            in_specs=[
                pl.BlockSpec((tm, tk), lambda i, k: (i, k)),        # adjacency tile
                pl.BlockSpec((tk, f_in), lambda i, k: (k, 0)),      # source features
                pl.BlockSpec((f_in, hid), lambda i, k: (0, 0)),     # W1 (pinned)
                pl.BlockSpec((1, hid), lambda i, k: (0, 0)),        # b1 (pinned)
                pl.BlockSpec((hid, out_dim), lambda i, k: (0, 0)),  # W2 (pinned)
                pl.BlockSpec((1, out_dim), lambda i, k: (0, 0)),    # b2 (pinned)
            ],
            out_specs=pl.BlockSpec((tm, out_dim), lambda i, k: (i, 0)),
            scratch_shapes=[pltpu.VMEM((tm, f_in), jnp.float32)],
        ),
        compiler_params=pltpu.CompilerParams(
            dimension_semantics=("parallel", "arbitrary"),
            vmem_limit_bytes=vmem_limit,
        ),
        cost_estimate=pl.CostEstimate(
            flops=flops, transcendentals=0, bytes_accessed=bytes_accessed
        ),
    )(adj_bf16, h, w1, b1, w2, b2)


# --------------------------------------------------------------------------- wrapper --
def permut_equiv_mp_forward(x, edge_index, params, *, eps=0.0, tm=256, tk=512):
    """Full forward. x:[N,in_dim] f32, edge_index:[2,E] int32, params: list of (w1,b1,w2,b2)."""
    n, in_dim = x.shape

    n_pad = _round_up(n, math.lcm(tm, tk))
    src, dst = edge_index[0], edge_index[1]

    # A[dst, src] = #edges src->dst ; self term (1+eps)*I folded in once for all layers.
    adj = jnp.zeros((n_pad, n_pad), jnp.float32).at[dst, src].add(1.0)
    idx = jnp.arange(n)
    adj = adj.at[idx, idx].add(1.0 + eps)
    adj_bf16 = adj.astype(jnp.bfloat16)  # small integer counts: exact in bf16

    f_pad = _round_up(in_dim, 128)
    h = _pad2d(x.astype(jnp.float32), n_pad, f_pad)

    for (w1, b1, w2, b2) in params:
        hid_pad = _round_up(w1.shape[1], 128)
        out_pad = _round_up(w2.shape[1], 128)
        w1p = _pad2d(w1, h.shape[1], hid_pad)
        b1p = _pad2d(b1.reshape(1, -1), 1, hid_pad)
        w2p = _pad2d(w2, hid_pad, out_pad)
        b2p = _pad2d(b2.reshape(1, -1), 1, out_pad)
        h = gin_layer(adj_bf16, h, w1p, b1p, w2p, b2p, tm=tm, tk=tk)

    out_dim = params[-1][2].shape[1]
    return h[:n, :out_dim]


# --------------------------------------------------------------------------- reference
def reference_forward(x, edge_index, params):
    """Plain-JAX reference (high-precision matmuls) for sanity checking."""
    n = x.shape[0]
    src, dst = edge_index[0], edge_index[1]
    adj_t = jnp.zeros((n, n), jnp.float32).at[dst, src].add(1.0)
    hp = jax.lax.Precision.HIGHEST
    h = x
    for (w1, b1, w2, b2) in params:
        z = h + jnp.dot(adj_t, h, precision=hp)
        h = jnp.dot(jnp.maximum(jnp.dot(z, w1, precision=hp) + b1, 0.0), w2, precision=hp) + b2
    return h


def init_linear(key, in_dim, out_dim):
    """Deterministic PyTorch-Linear-style init; weights stored as (in, out)."""
    kw, kb = jax.random.split(key)
    bound = 1.0 / (in_dim ** 0.5)
    w = jax.random.uniform(kw, (in_dim, out_dim), jnp.float32, -bound, bound)
    b = jax.random.uniform(kb, (out_dim,), jnp.float32, -bound, bound)
    return w, b


if __name__ == "__main__":
    N, E = 8, 16                 # nodes, edges
    in_dim, hid_dim = 4, 128     # hid_dim matches the PyTorch module default (lane-dense)
    num_layers = 2

    key = jax.random.PRNGKey(0)
    kx, ke, kp = jax.random.split(key, 3)

    x = jax.random.normal(kx, (N, in_dim), jnp.float32)
    edge_index = jax.random.randint(ke, (2, E), 0, N, jnp.int32)

    # parameters: layer 0: in_dim->hid->hid ; layers 1..: hid->hid->hid
    params = []
    d_in = in_dim
    for _ in range(num_layers):
        k1, k2, kp = jax.random.split(kp, 3)
        w1, b1 = init_linear(k1, d_in, hid_dim)
        w2, b2 = init_linear(k2, hid_dim, hid_dim)
        params.append((w1, b1, w2, b2))
        d_in = hid_dim

    out = permut_equiv_mp_forward(x, edge_index, params)
    out = jax.block_until_ready(out)

    ref = reference_forward(x, edge_index, params)
    assert out.shape == (N, hid_dim)
    assert jnp.allclose(out, ref, atol=2e-2, rtol=2e-2), "mismatch vs. reference"

    print("KERNEL_OK")
</pallas_src>

<mosaic_0001>
module attributes {stable_mosaic.version = 11 : i64} {
  func.func @gin_layer_kernel(%arg0: i32, %arg1: i32, %arg2: memref<256x512xbf16, #tpu.memory_space<vmem>>, %arg3: memref<512x128xf32, #tpu.memory_space<vmem>>, %arg4: memref<128x128xf32, #tpu.memory_space<vmem>>, %arg5: memref<1x128xf32, #tpu.memory_space<vmem>>, %arg6: memref<128x128xf32, #tpu.memory_space<vmem>>, %arg7: memref<1x128xf32, #tpu.memory_space<vmem>>, %arg8: memref<256x128xf32, #tpu.memory_space<vmem>>, %arg9: memref<256x128xf32, #tpu.memory_space<vmem>>) attributes {dimension_semantics = [#tpu.dimension_semantics<parallel>, #tpu.dimension_semantics<arbitrary>], iteration_bounds = array<i64: 2, 1>, scalar_prefetch = 0 : i64, scratch_operands = 1 : i64, tpu.core_type = #tpu.core_type<tc>, window_params = [{transform_indices = @transform_0, window_bounds = array<i64: 256, 512>}, {transform_indices = @transform_1, window_bounds = array<i64: 512, 128>}, {pipeline_mode = #tpu.pipeline_mode<synchronous>, transform_indices = @transform_2, window_bounds = array<i64: 128, 128>}, {pipeline_mode = #tpu.pipeline_mode<synchronous>, transform_indices = @transform_3, window_bounds = array<i64: 1, 128>}, {pipeline_mode = #tpu.pipeline_mode<synchronous>, transform_indices = @transform_4, window_bounds = array<i64: 128, 128>}, {pipeline_mode = #tpu.pipeline_mode<synchronous>, transform_indices = @transform_5, window_bounds = array<i64: 1, 128>}, {transform_indices = @transform_6, window_bounds = array<i64: 256, 128>}]} {
    %c0_i32 = arith.constant 0 : i32
    %0 = arith.cmpi eq, %arg1, %c0_i32 : i32
    %1 = arith.extui %0 : i1 to i32
    %c0_i32_0 = arith.constant 0 : i32
    %2 = arith.cmpi ne, %1, %c0_i32_0 : i32
    scf.if %2 {
      %cst_10 = arith.constant 0.000000e+00 : f32
      %13 = vector.broadcast %cst_10 : f32 to vector<256x128xf32>
      %c0_11 = arith.constant 0 : index
      %c0_12 = arith.constant 0 : index
      %14 = vector.load %arg9[%c0_11, %c0_12] : memref<256x128xf32, #tpu.memory_space<vmem>>, vector<256x128xf32>
      tpu.vector_store %arg9[%c0_11, %c0_12], %13 {strides = array<i32>} : memref<256x128xf32, #tpu.memory_space<vmem>>, vector<256x128xf32>,
    } else {
    }
    %c0 = arith.constant 0 : index
    %c0_1 = arith.constant 0 : index
    %3 = vector.load %arg9[%c0, %c0_1] : memref<256x128xf32, #tpu.memory_space<vmem>>, vector<256x128xf32>
    %c0_2 = arith.constant 0 : index
    %c0_3 = arith.constant 0 : index
    %4 = vector.load %arg2[%c0_2, %c0_3] : memref<256x512xbf16, #tpu.memory_space<vmem>>, vector<256x512xbf16>
    %5 = arith.extf %4 : vector<256x512xbf16> to vector<256x512xf32>
    %c0_4 = arith.constant 0 : index
    %c0_5 = arith.constant 0 : index
    %6 = vector.load %arg3[%c0_4, %c0_5] : memref<512x128xf32, #tpu.memory_space<vmem>>, vector<512x128xf32>
    %cst = arith.constant dense<0.000000e+00> : vector<256x128xf32>
    %7 = tpu.matmul %5, %6, %cst {dimension_numbers = #tpu.dot_dimension_numbers<[1], [0], [0], [1], [0, 0, 1, 1], [], []>} : vector<256x512xf32>, vector<512x128xf32>, vector<256x128xf32> -> vector<256x128xf32>
    %8 = arith.addf %3, %7 : vector<256x128xf32>
    %c0_6 = arith.constant 0 : index
    %c0_7 = arith.constant 0 : index
    %9 = vector.load %arg9[%c0_6, %c0_7] : memref<256x128xf32, #tpu.memory_space<vmem>>, vector<256x128xf32>
    tpu.vector_store %arg9[%c0_6, %c0_7], %8 {strides = array<i32>} : memref<256x128xf32, #tpu.memory_space<vmem>>, vector<256x128xf32>,
    %c0_i32_8 = arith.constant 0 : i32
    %10 = arith.cmpi eq, %arg1, %c0_i32_8 : i32
    %11 = arith.extui %10 : i1 to i32
    %c0_i32_9 = arith.constant 0 : i32
    %12 = arith.cmpi ne, %11, %c0_i32_9 : i32
    scf.if %12 {
      %c0_10 = arith.constant 0 : index
      %c0_11 = arith.constant 0 : index
      %13 = vector.load %arg9[%c0_10, %c0_11] : memref<256x128xf32, #tpu.memory_space<vmem>>, vector<256x128xf32>
      %c0_12 = arith.constant 0 : index
      %c0_13 = arith.constant 0 : index
      %14 = vector.load %arg4[%c0_12, %c0_13] : memref<128x128xf32, #tpu.memory_space<vmem>>, vector<128x128xf32>
      %cst_14 = arith.constant dense<0.000000e+00> : vector<256x128xf32>
      %15 = tpu.matmul %13, %14, %cst_14 {dimension_numbers = #tpu.dot_dimension_numbers<[1], [0], [0], [1], [0, 0, 1, 1], [], []>} : vector<256x128xf32>, vector<128x128xf32>, vector<256x128xf32> -> vector<256x128xf32>
      %c0_15 = arith.constant 0 : index
      %c0_16 = arith.constant 0 : index
      %16 = vector.load %arg5[%c0_15, %c0_16] : memref<1x128xf32, #tpu.memory_space<vmem>>, vector<1x128xf32>
      %17 = vector.broadcast %16 : vector<1x128xf32> to vector<256x128xf32>
      %18 = arith.addf %15, %17 : vector<256x128xf32>
      %cst_17 = arith.constant 0.000000e+00 : f32
      %19 = vector.broadcast %cst_17 : f32 to vector<256x128xf32>
      %20 = arith.maximumf %18, %19 : vector<256x128xf32>
      %c0_18 = arith.constant 0 : index
      %c0_19 = arith.constant 0 : index
      %21 = vector.load %arg6[%c0_18, %c0_19] : memref<128x128xf32, #tpu.memory_space<vmem>>, vector<128x128xf32>
      %cst_20 = arith.constant dense<0.000000e+00> : vector<256x128xf32>
      %22 = tpu.matmul %20, %21, %cst_20 {dimension_numbers = #tpu.dot_dimension_numbers<[1], [0], [0], [1], [0, 0, 1, 1], [], []>} : vector<256x128xf32>, vector<128x128xf32>, vector<256x128xf32> -> vector<256x128xf32>
      %c0_21 = arith.constant 0 : index
      %c0_22 = arith.constant 0 : index
      %23 = vector.load %arg7[%c0_21, %c0_22] : memref<1x128xf32, #tpu.memory_space<vmem>>, vector<1x128xf32>
      %24 = vector.broadcast %23 : vector<1x128xf32> to vector<256x128xf32>
      %25 = arith.addf %22, %24 : vector<256x128xf32>
      %c0_23 = arith.constant 0 : index
      %c0_24 = arith.constant 0 : index
      %26 = vector.load %arg8[%c0_23, %c0_24] : memref<256x128xf32, #tpu.memory_space<vmem>>, vector<256x128xf32>
      tpu.vector_store %arg8[%c0_23, %c0_24], %25 {strides = array<i32>} : memref<256x128xf32, #tpu.memory_space<vmem>>, vector<256x128xf32>,
    } else {
    }
    return
  }
  func.func @transform_0(%arg0: i32, %arg1: i32) -> (i32, i32) {
    %c0_i32 = arith.constant 0 : i32
    return %arg0, %arg1 : i32, i32
  }
  func.func @transform_1(%arg0: i32, %arg1: i32) -> (i32, i32) {
    %c0_i32 = arith.constant 0 : i32
    %c0_i32_0 = arith.constant 0 : i32
    return %arg1, %c0_i32 : i32, i32
  }
  func.func @transform_2(%arg0: i32, %arg1: i32) -> (i32, i32) {
    %c0_i32 = arith.constant 0 : i32
    %c0_i32_0 = arith.constant 0 : i32
    %c0_i32_1 = arith.constant 0 : i32
    return %c0_i32, %c0_i32_0 : i32, i32
  }
  func.func @transform_3(%arg0: i32, %arg1: i32) -> (i32, i32) {
    %c0_i32 = arith.constant 0 : i32
    %c0_i32_0 = arith.constant 0 : i32
    %c0_i32_1 = arith.constant 0 : i32
    return %c0_i32, %c0_i32_0 : i32, i32
  }
  func.func @transform_4(%arg0: i32, %arg1: i32) -> (i32, i32) {
    %c0_i32 = arith.constant 0 : i32
    %c0_i32_0 = arith.constant 0 : i32
    %c0_i32_1 = arith.constant 0 : i32
    return %c0_i32, %c0_i32_0 : i32, i32
  }
  func.func @transform_5(%arg0: i32, %arg1: i32) -> (i32, i32) {
    %c0_i32 = arith.constant 0 : i32
    %c0_i32_0 = arith.constant 0 : i32
    %c0_i32_1 = arith.constant 0 : i32
    return %c0_i32, %c0_i32_0 : i32, i32
  }
  func.func @transform_6(%arg0: i32, %arg1: i32) -> (i32, i32) {
    %c0_i32 = arith.constant 0 : i32
    %c0_i32_0 = arith.constant 0 : i32
    return %arg0, %c0_i32 : i32, i32
  }
}

</mosaic_0001>

<llo_original>
// kernel: tpu_custom_call.1
$region0: #{tpu_custom_call.1}
  #allocation0 [shape = 'u32[]', space=smem, size = 0x4, offset = 0x4, fixed_abs, tag = 'smem constant byte address 0x4 - core index']
  #allocation1 [shape = 'u32[144,128]{1,0:T(1,128)}', space=vmem, size = 0x12000, scoped, tag = 'internal scratch']
  #allocation2 [shape = 'f32[256,128]{1,0:T(8,128)}', space=vmem, size = 0x20000, scoped, tag = 'scratch operand']
  %s0 = inlined_call_operand.hbm [shape: bf16[512,512], index: 0, kind: input, shape index: {}]
  %s1 = inlined_call_operand.hbm [shape: f32[512,128], index: 1, kind: input, shape index: {}]
  %s2 = inlined_call_operand.hbm [shape: f32[128,128], index: 2, kind: input, shape index: {}]
  %s3 = inlined_call_operand.vmem [shape: f32[1,128], index: 3, kind: input, shape index: {}]
  %s4 = inlined_call_operand.hbm [shape: f32[128,128], index: 4, kind: input, shape index: {}]
  %s5 = inlined_call_operand.vmem [shape: f32[1,128], index: 5, kind: input, shape index: {}]
  %s6 = inlined_call_operand.hbm [shape: f32[512,128], index: 6, kind: output, shape index: {}]
  %s7 = sld [smem:[#allocation0]]
  $region81: #{tpu_custom_call.1} parent=0
    _
  %s9 = ssub.s32 1, %s7
  %s10 = scalar_select 0, %s9, %s7
  $region1: #{tpu_custom_call.1} parent=0
    #allocation3 [shape = 'u8[524288]{0}', space=vmem, size = 0x80000, scoped, tag = 'input window, operand 0']
    #allocation4 [shape = 's32[2]{0}', space=sflag, size = 0x8, scoped, tag = 'scoped memory for tpu_custom_call.1']
    #allocation5 [shape = 's32[2]{0}', space=sflag, size = 0x8, scoped, tag = 'scoped memory for tpu_custom_call.1']
    #allocation6 [shape = 'u8[262144]{0}', space=vmem, size = 0x40000, scoped, tag = 'input window, operand 1, single buffered']
    #allocation7 [shape = 's32[1]{0}', space=sflag, size = 0x4, scoped, tag = 'scoped memory for tpu_custom_call.1']
    #allocation8 [shape = 'u8[65536]{0}', space=vmem, size = 0x10000, scoped, tag = 'input window, operand 2, single buffered']
    #allocation9 [shape = 'u8[65536]{0}', space=vmem, size = 0x10000, scoped, tag = 'input window, operand 4, single buffered']
    #allocation10 [shape = 's32[1]{0}', space=sflag, size = 0x4, scoped, tag = 'scoped memory for tpu_custom_call.1']
    #allocation11 [shape = 'u8[262144]{0}', space=vmem, size = 0x40000, scoped, tag = 'output window, operand 0']
    %11 = vsyncpa [#allocation4], 0
    %s12 = scalar_lea.sflag [#allocation4], 1
    %13 = vsyncpa %s12, 0
    %14 = vsyncpa [#allocation7], 0
    %15 = vsyncpa [#allocation10], 0
    %16 = vsyncpa [#allocation5], 0
    %s17 = scalar_lea.sflag [#allocation5], 1
    %18 = vsyncpa %s17, 0
    loop: start=0, step=1, limit=4
    $region2: #{tpu_custom_call.1} parent=1 // loop_pre_header
      _
    $region3: #{tpu_custom_call.1} parent=1 // loop_header
      %s20 = sphi 0, %s24
      %p21 = scmp.ge.s32.totalorder %s20, 4
      %s27 = sphi 0, %s39
      %s28 = sphi 0, %s35
      %s29 = sphi 0, %s27
      %s30 = sphi 0, %s28
      %s31 = sphi 0, %s29
      %s32 = sphi 0, %s30
      %s44 = sphi 0, %s46
      %s47 = sphi 0, %s44
      %s48 = sphi 0, %s47
      %s64 = sphi 0, %s48
      %s70 = sphi 0, %s72
      %s73 = sphi 0, %s70
      %s74 = sphi 0, %s73
      %s90 = sphi 0, %s74
      %s94 = sphi 0, %s94
      %s96 = sphi 0, %s94
      %s97 = sphi 0, %s96
      %s111 = sphi 0, %s97
      %s115 = sphi 0, %s115
      %s117 = sphi 0, %s115
      %s118 = sphi 0, %s117
      %s132 = sphi 0, %s118
      %s136 = sphi 0, %s136
      %s138 = sphi 0, %s136
      %s139 = sphi 0, %s138
      %s153 = sphi 0, %s139
      %s157 = sphi 0, %s157
      %s159 = sphi 0, %s157
      %s160 = sphi 0, %s159
      %s174 = sphi 0, %s160
      %s180 = sphi 0, %s182
      %s183 = sphi 0, %s180
      %s184 = sphi 0, %s183
      %s200 = sphi 0, %s184
    $region4: #{tpu_custom_call.1} parent=1 // loop_header_branch
      %23 = sbr.rel (%p21) target = $region8
    $region5: #{tpu_custom_call.1} parent=1 // loop_body
      %s25 = ssub.s32 %s20, 1
      %s26 = ssub.s32 %s20, 2
      %s33 = sadd.s32 1, %s28
      %p34 = scmp.ge.s32.totalorder %s33, 1
      %s35 = scalar_select %p34, 0, %s33
      %s36 = sadd.s32 1, %s27
      %s37 = scalar_select %p34, %s36, %s27
      %p38 = scmp.ge.s32.totalorder %s37, 2
      %s39 = scalar_select %p38, 0, %s37
      %s40 = ssub.s32 %s27, %s39
      %s41 = ssub.s32 %s28, %s35
      %s42 = sor.u32 %s40, %s41
      %p43 = scmp.eq.s32.totalorder %s42, 0
      %s45 = sadd.s32 %s44, 1
      %s46 = scalar_select %p43, %s44, %s45
      %p49 = pneg %p43
      %p50 = scmp.eq.s32.totalorder %s20, 1
      %p51 = por %p49, %p50
      %p52 = scmp.ne.s32.totalorder %s44, %s47
      %p53 = scmp.eq.s32.totalorder %s20, 0
      %p54 = por %p52, %p53
      %p55 = scmp.ne.s32.totalorder %s44, %s47
      %p56 = scmp.eq.s32.totalorder %s25, 1
      %p57 = por %p55, %p56
      %p58 = scmp.ne.s32.totalorder %s47, %s48
      %p59 = scmp.eq.s32.totalorder %s25, 0
      %p60 = por %p58, %p59
      %p61 = scmp.ne.s32.totalorder %s47, %s48
      %p62 = scmp.eq.s32.totalorder %s26, 1
      %p63 = por %p61, %p62
      %p65 = scmp.ne.s32.totalorder %s48, %s64
      %p66 = scmp.eq.s32.totalorder %s26, 0
      %p67 = por %p65, %p66
      %s68 = ssub.s32 %s28, %s35
      %p69 = scmp.eq.s32.totalorder %s68, 0
      %s71 = sadd.s32 %s70, 1
      %s72 = scalar_select %p69, %s70, %s71
      %p75 = pneg %p69
      %p76 = scmp.eq.s32.totalorder %s20, 1
      %p77 = por %p75, %p76
      %p78 = scmp.ne.s32.totalorder %s70, %s73
      %p79 = scmp.eq.s32.totalorder %s20, 0
      %p80 = por %p78, %p79
      %p81 = scmp.ne.s32.totalorder %s70, %s73
      %p82 = scmp.eq.s32.totalorder %s25, 1
      %p83 = por %p81, %p82
      %p84 = scmp.ne.s32.totalorder %s73, %s74
      %p85 = scmp.eq.s32.totalorder %s25, 0
      %p86 = por %p84, %p85
      %p87 = scmp.ne.s32.totalorder %s73, %s74
      %p88 = scmp.eq.s32.totalorder %s26, 1
      %p89 = por %p87, %p88
      %p91 = scmp.ne.s32.totalorder %s74, %s90
      %p92 = scmp.eq.s32.totalorder %s26, 0
      %p93 = por %p91, %p92
      %s95 = sadd.s32 %s94, 1
      %p98 = scmp.eq.s32.totalorder %s20, 1
      %p99 = scmp.ne.s32.totalorder %s94, %s96
      %p100 = scmp.eq.s32.totalorder %s20, 0
      %p101 = por %p99, %p100
      %p102 = scmp.ne.s32.totalorder %s94, %s96
      %p103 = scmp.eq.s32.totalorder %s25, 1
      %p104 = por %p102, %p103
      %p105 = scmp.ne.s32.totalorder %s96, %s97
      %p106 = scmp.eq.s32.totalorder %s25, 0
      %p107 = por %p105, %p106
      %p108 = scmp.ne.s32.totalorder %s96, %s97
      %p109 = scmp.eq.s32.totalorder %s26, 1
      %p110 = por %p108, %p109
      %p112 = scmp.ne.s32.totalorder %s97, %s111
      %p113 = scmp.eq.s32.totalorder %s26, 0
      %p114 = por %p112, %p113
      %s116 = sadd.s32 %s115, 1
      %p119 = scmp.eq.s32.totalorder %s20, 1
      %p120 = scmp.ne.s32.totalorder %s115, %s117
      %p121 = scmp.eq.s32.totalorder %s20, 0
      %p122 = por %p120, %p121
      %p123 = scmp.ne.s32.totalorder %s115, %s117
      %p124 = scmp.eq.s32.totalorder %s25, 1
      %p125 = por %p123, %p124
      %p126 = scmp.ne.s32.totalorder %s117, %s118
      %p127 = scmp.eq.s32.totalorder %s25, 0
      %p128 = por %p126, %p127
      %p129 = scmp.ne.s32.totalorder %s117, %s118
      %p130 = scmp.eq.s32.totalorder %s26, 1
      %p131 = por %p129, %p130
      %p133 = scmp.ne.s32.totalorder %s118, %s132
      %p134 = scmp.eq.s32.totalorder %s26, 0
      %p135 = por %p133, %p134
      %s137 = sadd.s32 %s136, 1
      %p140 = scmp.eq.s32.totalorder %s20, 1
      %p141 = scmp.ne.s32.totalorder %s136, %s138
      %p142 = scmp.eq.s32.totalorder %s20, 0
      %p143 = por %p141, %p142
      %p144 = scmp.ne.s32.totalorder %s136, %s138
      %p145 = scmp.eq.s32.totalorder %s25, 1
      %p146 = por %p144, %p145
      %p147 = scmp.ne.s32.totalorder %s138, %s139
      %p148 = scmp.eq.s32.totalorder %s25, 0
      %p149 = por %p147, %p148
      %p150 = scmp.ne.s32.totalorder %s138, %s139
      %p151 = scmp.eq.s32.totalorder %s26, 1
      %p152 = por %p150, %p151
      %p154 = scmp.ne.s32.totalorder %s139, %s153
      %p155 = scmp.eq.s32.totalorder %s26, 0
      %p156 = por %p154, %p155
      %s158 = sadd.s32 %s157, 1
      %p161 = scmp.eq.s32.totalorder %s20, 1
      %p162 = scmp.ne.s32.totalorder %s157, %s159
      %p163 = scmp.eq.s32.totalorder %s20, 0
      %p164 = por %p162, %p163
      %p165 = scmp.ne.s32.totalorder %s157, %s159
      %p166 = scmp.eq.s32.totalorder %s25, 1
      %p167 = por %p165, %p166
      %p168 = scmp.ne.s32.totalorder %s159, %s160
      %p169 = scmp.eq.s32.totalorder %s25, 0
      %p170 = por %p168, %p169
      %p171 = scmp.ne.s32.totalorder %s159, %s160
      %p172 = scmp.eq.s32.totalorder %s26, 1
      %p173 = por %p171, %p172
      %p175 = scmp.ne.s32.totalorder %s160, %s174
      %p176 = scmp.eq.s32.totalorder %s26, 0
      %p177 = por %p175, %p176
      %s178 = ssub.s32 %s27, %s39
      %p179 = scmp.eq.s32.totalorder %s178, 0
      %s181 = sadd.s32 %s180, 1
      %s182 = scalar_select %p179, %s180, %s181
      %p185 = pneg %p179
      %p186 = scmp.eq.s32.totalorder %s20, 1
      %p187 = por %p185, %p186
      %p188 = scmp.ne.s32.totalorder %s180, %s183
      %p189 = scmp.eq.s32.totalorder %s20, 0
      %p190 = por %p188, %p189
      %p191 = scmp.ne.s32.totalorder %s180, %s183
      %p192 = scmp.eq.s32.totalorder %s25, 1
      %p193 = por %p191, %p192
      %p194 = scmp.ne.s32.totalorder %s183, %s184
      %p195 = scmp.eq.s32.totalorder %s25, 0
      %p196 = por %p194, %p195
      %p197 = scmp.ne.s32.totalorder %s183, %s184
      %p198 = scmp.eq.s32.totalorder %s26, 1
      %p199 = por %p197, %p198
      %p201 = scmp.ne.s32.totalorder %s184, %s200
      %p202 = scmp.eq.s32.totalorder %s26, 0
      %p203 = por %p201, %p202
      %p204 = scmp.le.s32.totalorder 1, %s20
      %p205 = scmp.lt.s32.totalorder %s20, 3
      %p206 = pnand %p204, %p205
      %p207 = pneg %p206
      // Predicated region
      $region9: #{tpu_custom_call.1} parent=5 // pred_check
        _
      $region10: #{tpu_custom_call.1} parent=5 // pred_check_branch
        %209 = sbr.rel (%p206) target = $region12
      $region11: #{tpu_custom_call.1} parent=5 // pred_region
        %s210 = ssub.s32 %s20, 1
        // Predicated region
        $region13: #{tpu_custom_call.1} parent=11 // pred_check
          %p211 = pneg %p86
        $region14: #{tpu_custom_call.1} parent=11 // pred_check_branch
          %213 = sbr.rel (%p211) target = $region16
        $region15: #{tpu_custom_call.1} parent=11 // pred_region
          %s214 = smul.u32 64, %s30
          %s216 = ssub.s32 8192, 8192
          %217 = vsyncadd [#allocation7], %s216
          %s218 = smul.addr %s214, 128
          %s219 = scalar_lea.hbm %s1, %s218
          %s220 = sshll.u32 [#allocation6], 4
          %s221 = int_to_ptr.vmem [resolvable:$true] %s220
          %226 = dma.hbm_to_vmem [thread:$0]  %s219, 8192, %s221, [#allocation7], 128, 128, 8
        $region16: #{tpu_custom_call.1} parent=11 // pred_fallthru
          _
        // Predicated region
        $region17: #{tpu_custom_call.1} parent=11 // pred_check
          %p227 = pneg %p107
        $region18: #{tpu_custom_call.1} parent=11 // pred_check_branch
          %229 = sbr.rel (%p227) target = $region20
        $region19: #{tpu_custom_call.1} parent=11 // pred_region
          %s231 = ssub.s32 2048, 2048
          %232 = vsyncadd [#allocation7], %s231
          %s233 = sshll.u32 [#allocation8], 4
          %s234 = int_to_ptr.vmem [resolvable:$true] %s233
          %239 = dma.hbm_to_vmem [thread:$0]  %s2, 2048, %s234, [#allocation7], 128, 128, 8
        $region20: #{tpu_custom_call.1} parent=11 // pred_fallthru
          _
        // Predicated region
        $region21: #{tpu_custom_call.1} parent=11 // pred_check
          %p240 = pneg %p128
        $region22: #{tpu_custom_call.1} parent=11 // pred_check_branch
          %242 = sbr.rel (%p240) target = $region24
        $region23: #{tpu_custom_call.1} parent=11 // pred_region
          _
        $region24: #{tpu_custom_call.1} parent=11 // pred_fallthru
          _
        // Predicated region
        $region25: #{tpu_custom_call.1} parent=11 // pred_check
          %p243 = pneg %p149
        $region26: #{tpu_custom_call.1} parent=11 // pred_check_branch
          %245 = sbr.rel (%p243) target = $region28
        $region27: #{tpu_custom_call.1} parent=11 // pred_region
          %s247 = ssub.s32 2048, 2048
          %248 = vsyncadd [#allocation10], %s247
          %s249 = sshll.u32 [#allocation9], 4
          %s250 = int_to_ptr.vmem [resolvable:$true] %s249
          %255 = dma.hbm_to_vmem [thread:$0]  %s4, 2048, %s250, [#allocation10], 128, 128, 8
        $region28: #{tpu_custom_call.1} parent=11 // pred_fallthru
          _
        // Predicated region
        $region29: #{tpu_custom_call.1} parent=11 // pred_check
          %p256 = pneg %p170
        $region30: #{tpu_custom_call.1} parent=11 // pred_check_branch
          %258 = sbr.rel (%p256) target = $region32
        $region31: #{tpu_custom_call.1} parent=11 // pred_region
          _
        $region32: #{tpu_custom_call.1} parent=11 // pred_fallthru
          _
      $region12: #{tpu_custom_call.1} parent=5 // pred_fallthru
        _
      %p259 = scmp.lt.s32.totalorder %s20, 2
      // Predicated region
      $region33: #{tpu_custom_call.1} parent=5 // pred_check
        %p260 = pneg %p259
      $region34: #{tpu_custom_call.1} parent=5 // pred_check_branch
        %262 = sbr.rel (%p260) target = $region36
      $region35: #{tpu_custom_call.1} parent=5 // pred_region
        // Predicated region
        $region37: #{tpu_custom_call.1} parent=35 // pred_check
          %p263 = pneg %p54
        $region38: #{tpu_custom_call.1} parent=35 // pred_check_branch
          %265 = sbr.rel (%p263) target = $region40
        $region39: #{tpu_custom_call.1} parent=35 // pred_region
          %s266 = sand.u32 %s44, 1
          %s267 = scalar_lea.sflag [#allocation4], %s266
          %s268 = sand.u32 %s44, 1
          %s269 = smul.addr %s268, 512
          %s270 = scalar_lea.vmem [#allocation3], %s269
          %s271 = smul.u32 32, %s27
          %s272 = smul.u32 4, %s28
          %s274 = ssub.s32 8192, 8192
          %275 = vsyncadd %s267, %s274
          %s276 = smul.addr %s271, 4
          %s277 = sadd.s32 %s272, %s276
          %s278 = smul.addr %s277, 64
          %s279 = scalar_lea.hbm %s0, %s278
          %s280 = sshll.u32 %s270, 4
          %s281 = int_to_ptr.vmem [resolvable:$true] %s280
          %286 = dma.hbm_to_vmem [thread:$0]  %s279, 8192, %s281, %s267, 256, 256, 16
        $region40: #{tpu_custom_call.1} parent=35 // pred_fallthru
          _
      $region36: #{tpu_custom_call.1} parent=5 // pred_fallthru
        _
      %p287 = scmp.le.s32.totalorder 1, %s20
      %p288 = scmp.lt.s32.totalorder %s20, 3
      %p289 = pnand %p287, %p288
      %p290 = pneg %p289
      // Predicated region
      $region41: #{tpu_custom_call.1} parent=5 // pred_check
        _
      $region42: #{tpu_custom_call.1} parent=5 // pred_check_branch
        %292 = sbr.rel (%p289) target = $region44
      $region43: #{tpu_custom_call.1} parent=5 // pred_region
        %s293 = ssub.s32 %s20, 1
        %s294 = sand.u32 %s47, 1
        %s295 = scalar_lea.sflag [#allocation4], %s294
        %s296 = sand.u32 %s47, 1
        %s297 = smul.addr %s296, 512
        %s298 = scalar_lea.vmem [#allocation3], %s297
        // Predicated region
        $region45: #{tpu_custom_call.1} parent=43 // pred_check
          %p299 = pneg %p60
        $region46: #{tpu_custom_call.1} parent=43 // pred_check_branch
          %301 = sbr.rel (%p299) target = $region48
        $region47: #{tpu_custom_call.1} parent=43 // pred_region
          %302 = dma.done %s295, 8192
        $region48: #{tpu_custom_call.1} parent=43 // pred_fallthru
          _
        // Predicated region
        $region49: #{tpu_custom_call.1} parent=43 // pred_check
          %p303 = pneg %p86
        $region50: #{tpu_custom_call.1} parent=43 // pred_check_branch
          %305 = sbr.rel (%p303) target = $region52
        $region51: #{tpu_custom_call.1} parent=43 // pred_region
          %306 = dma.done [#allocation7], 8192
        $region52: #{tpu_custom_call.1} parent=43 // pred_fallthru
          _
        // Predicated region
        $region53: #{tpu_custom_call.1} parent=43 // pred_check
          %p307 = pneg %p107
        $region54: #{tpu_custom_call.1} parent=43 // pred_check_branch
          %309 = sbr.rel (%p307) target = $region56
        $region55: #{tpu_custom_call.1} parent=43 // pred_region
          %310 = dma.done [#allocation7], 2048
        $region56: #{tpu_custom_call.1} parent=43 // pred_fallthru
          _
        // Predicated region
        $region57: #{tpu_custom_call.1} parent=43 // pred_check
          %p311 = pneg %p149
        $region58: #{tpu_custom_call.1} parent=43 // pred_check_branch
          %313 = sbr.rel (%p311) target = $region60
        $region59: #{tpu_custom_call.1} parent=43 // pred_region
          %314 = dma.done [#allocation10], 2048
        $region60: #{tpu_custom_call.1} parent=43 // pred_fallthru
          _
        %s315 = sand.u32 %s47, 1
        %s316 = scalar_lea.sflag [#allocation4], %s315
        %s317 = sand.u32 %s47, 1
        %s318 = smul.addr %s317, 512
        %s319 = scalar_lea.vmem [#allocation3], %s318
        %p320 = pneg %p60
        %p321 = pneg %p57
        %p322 = pneg %p86
        %p323 = pneg %p83
        %p324 = pneg %p107
        %p325 = pneg %p104
        %p326 = pneg %p128
        %p327 = pneg %p125
        %p328 = pneg %p149
        %p329 = pneg %p146
        %p330 = pneg %p170
        %p331 = pneg %p167
        %p332 = pneg %p196
        %p333 = pneg %p193
        %s334 = sand.u32 %s183, 1
        %s335 = scalar_lea.sflag [#allocation5], %s334
        %s336 = sand.u32 %s183, 1
        %s337 = smul.addr %s336, 256
        %s338 = scalar_lea.vmem [#allocation11], %s337
        %s339 = smul.u32 32, %s29
        %s340 = smul.u32 4, %s30
        %s341 = smul.u32 64, %s30
        %s342 = smul.u32 32, %s29
        %p343 = scmp.eq.s32.totalorder %s30, 0
        // Predicated region
        $region61: #{tpu_custom_call.1} parent=43 // pred_check
          %p344 = pneg %p343
        $region62: #{tpu_custom_call.1} parent=43 // pred_check_branch
          %346 = sbr.rel (%p344) target = $region64
        $region63: #{tpu_custom_call.1} parent=43 // pred_region
          %347 = vst [vmem:[#allocation2] sm:$0xff] 0.0
          %348 = vst [vmem:[#allocation2 + $0x8] sm:$0xff] 0.0
          %349 = vst [vmem:[#allocation2 + $0x10] sm:$0xff] 0.0
          %350 = vst [vmem:[#allocation2 + $0x18] sm:$0xff] 0.0
          %351 = vst [vmem:[#allocation2 + $0x20] sm:$0xff] 0.0
          %352 = vst [vmem:[#allocation2 + $0x28] sm:$0xff] 0.0
          %353 = vst [vmem:[#allocation2 + $0x30] sm:$0xff] 0.0
          %354 = vst [vmem:[#allocation2 + $0x38] sm:$0xff] 0.0
          %355 = vst [vmem:[#allocation2 + $0x40] sm:$0xff] 0.0
          %356 = vst [vmem:[#allocation2 + $0x48] sm:$0xff] 0.0
          %357 = vst [vmem:[#allocation2 + $0x50] sm:$0xff] 0.0
          %358 = vst [vmem:[#allocation2 + $0x58] sm:$0xff] 0.0
          %359 = vst [vmem:[#allocation2 + $0x60] sm:$0xff] 0.0
          %360 = vst [vmem:[#allocation2 + $0x68] sm:$0xff] 0.0
          %361 = vst [vmem:[#allocation2 + $0x70] sm:$0xff] 0.0
          %362 = vst [vmem:[#allocation2 + $0x78] sm:$0xff] 0.0
          %363 = vst [vmem:[#allocation2 + $0x80] sm:$0xff] 0.0
          %364 = vst [vmem:[#allocation2 + $0x88] sm:$0xff] 0.0
          %365 = vst [vmem:[#allocation2 + $0x90] sm:$0xff] 0.0
          %366 = vst [vmem:[#allocation2 + $0x98] sm:$0xff] 0.0
          %367 = vst [vmem:[#allocation2 + $0xa0] sm:$0xff] 0.0
          %368 = vst [vmem:[#allocation2 + $0xa8] sm:$0xff] 0.0
          %369 = vst [vmem:[#allocation2 + $0xb0] sm:$0xff] 0.0
          %370 = vst [vmem:[#allocation2 + $0xb8] sm:$0xff] 0.0
          %371 = vst [vmem:[#allocation2 + $0xc0] sm:$0xff] 0.0
          %372 = vst [vmem:[#allocation2 + $0xc8] sm:$0xff] 0.0
          %373 = vst [vmem:[#allocation2 + $0xd0] sm:$0xff] 0.0
          %374 = vst [vmem:[#allocation2 + $0xd8] sm:$0xff] 0.0
          %375 = vst [vmem:[#allocation2 + $0xe0] sm:$0xff] 0.0
          %376 = vst [vmem:[#allocation2 + $0xe8] sm:$0xff] 0.0
          %377 = vst [vmem:[#allocation2 + $0xf0] sm:$0xff] 0.0
          %378 = vst [vmem:[#allocation2 + $0xf8] sm:$0xff] 0.0
        $region64: #{tpu_custom_call.1} parent=43 // pred_fallthru
          _
        %v379 = vld [vmem:[#allocation2] sm:$0xff]
        %v380 = vld [vmem:[#allocation2 + $0x8] sm:$0xff]
        %v381 = vld [vmem:[#allocation2 + $0x10] sm:$0xff]
        %v382 = vld [vmem:[#allocation2 + $0x18] sm:$0xff]
        %v383 = vld [vmem:[#allocation2 + $0x20] sm:$0xff]
        %v384 = vld [vmem:[#allocation2 + $0x28] sm:$0xff]
        %v385 = vld [vmem:[#allocation2 + $0x30] sm:$0xff]
        %v386 = vld [vmem:[#allocation2 + $0x38] sm:$0xff]
        %v387 = vld [vmem:[#allocation2 + $0x40] sm:$0xff]
        %v388 = vld [vmem:[#allocation2 + $0x48] sm:$0xff]
        %v389 = vld [vmem:[#allocation2 + $0x50] sm:$0xff]
        %v390 = vld [vmem:[#allocation2 + $0x58] sm:$0xff]
        %v391 = vld [vmem:[#allocation2 + $0x60] sm:$0xff]
        %v392 = vld [vmem:[#allocation2 + $0x68] sm:$0xff]
        %v393 = vld [vmem:[#allocation2 + $0x70] sm:$0xff]
        %v394 = vld [vmem:[#allocation2 + $0x78] sm:$0xff]
        %v395 = vld [vmem:[#allocation2 + $0x80] sm:$0xff]
        %v396 = vld [vmem:[#allocation2 + $0x88] sm:$0xff]
        %v397 = vld [vmem:[#allocation2 + $0x90] sm:$0xff]
        %v398 = vld [vmem:[#allocation2 + $0x98] sm:$0xff]
        %v399 = vld [vmem:[#allocation2 + $0xa0] sm:$0xff]
        %v400 = vld [vmem:[#allocation2 + $0xa8] sm:$0xff]
        %v401 = vld [vmem:[#allocation2 + $0xb0] sm:$0xff]
        %v402 = vld [vmem:[#allocation2 + $0xb8] sm:$0xff]
        %v403 = vld [vmem:[#allocation2 + $0xc0] sm:$0xff]
        %v404 = vld [vmem:[#allocation2 + $0xc8] sm:$0xff]
        %v405 = vld [vmem:[#allocation2 + $0xd0] sm:$0xff]
        %v406 = vld [vmem:[#allocation2 + $0xd8] sm:$0xff]
        %v407 = vld [vmem:[#allocation2 + $0xe0] sm:$0xff]
        %v408 = vld [vmem:[#allocation2 + $0xe8] sm:$0xff]
        %v409 = vld [vmem:[#allocation2 + $0xf0] sm:$0xff]
        %v410 = vld [vmem:[#allocation2 + $0xf8] sm:$0xff]
        %v411 = vld [vmem:[%s298] sm:$0xff]
        %v412 = vld [vmem:[%s298 + $0x8] sm:$0xff]
        %v413 = vld [vmem:[%s298 + $0x10] sm:$0xff]
        %v414 = vld [vmem:[%s298 + $0x18] sm:$0xff]
        %v415 = vld [vmem:[%s298 + $0x20] sm:$0xff]
        %v416 = vld [vmem:[%s298 + $0x28] sm:$0xff]
        %v417 = vld [vmem:[%s298 + $0x30] sm:$0xff]
        %v418 = vld [vmem:[%s298 + $0x38] sm:$0xff]
        %v419 = vld [vmem:[%s298 + $0x40] sm:$0xff]
        %v420 = vld [vmem:[%s298 + $0x48] sm:$0xff]
        %v421 = vld [vmem:[%s298 + $0x50] sm:$0xff]
        %v422 = vld [vmem:[%s298 + $0x58] sm:$0xff]
        %v423 = vld [vmem:[%s298 + $0x60] sm:$0xff]
        %v424 = vld [vmem:[%s298 + $0x68] sm:$0xff]
        %v425 = vld [vmem:[%s298 + $0x70] sm:$0xff]
        %v426 = vld [vmem:[%s298 + $0x78] sm:$0xff]
        %v427 = vld [vmem:[%s298 + $0x80] sm:$0xff]
        %v428 = vld [vmem:[%s298 + $0x88] sm:$0xff]
        %v429 = vld [vmem:[%s298 + $0x90] sm:$0xff]
        %v430 = vld [vmem:[%s298 + $0x98] sm:$0xff]
        %v431 = vld [vmem:[%s298 + $0xa0] sm:$0xff]
        %v432 = vld [vmem:[%s298 + $0xa8] sm:$0xff]
        %v433 = vld [vmem:[%s298 + $0xb0] sm:$0xff]
        %v434 = vld [vmem:[%s298 + $0xb8] sm:$0xff]
        %v435 = vld [vmem:[%s298 + $0xc0] sm:$0xff]
        %v436 = vld [vmem:[%s298 + $0xc8] sm:$0xff]
        %v437 = vld [vmem:[%s298 + $0xd0] sm:$0xff]
        %v438 = vld [vmem:[%s298 + $0xd8] sm:$0xff]
        %v439 = vld [vmem:[%s298 + $0xe0] sm:$0xff]
        %v440 = vld [vmem:[%s298 + $0xe8] sm:$0xff]
        %v441 = vld [vmem:[%s298 + $0xf0] sm:$0xff]
        %v442 = vld [vmem:[%s298 + $0xf8] sm:$0xff]
        %v443 = vld [vmem:[%s298 + $0x100] sm:$0xff]
        %v444 = vld [vmem:[%s298 + $0x108] sm:$0xff]
        %v445 = vld [vmem:[%s298 + $0x110] sm:$0xff]
        %v446 = vld [vmem:[%s298 + $0x118] sm:$0xff]
        %v447 = vld [vmem:[%s298 + $0x120] sm:$0xff]
        %v448 = vld [vmem:[%s298 + $0x128] sm:$0xff]
        %v449 = vld [vmem:[%s298 + $0x130] sm:$0xff]
        %v450 = vld [vmem:[%s298 + $0x138] sm:$0xff]
        %v451 = vld [vmem:[%s298 + $0x140] sm:$0xff]
        %v452 = vld [vmem:[%s298 + $0x148] sm:$0xff]
        %v453 = vld [vmem:[%s298 + $0x150] sm:$0xff]
        %v454 = vld [vmem:[%s298 + $0x158] sm:$0xff]
        %v455 = vld [vmem:[%s298 + $0x160] sm:$0xff]
        %v456 = vld [vmem:[%s298 + $0x168] sm:$0xff]
        %v457 = vld [vmem:[%s298 + $0x170] sm:$0xff]
        %v458 = vld [vmem:[%s298 + $0x178] sm:$0xff]
        %v459 = vld [vmem:[%s298 + $0x180] sm:$0xff]
        %v460 = vld [vmem:[%s298 + $0x188] sm:$0xff]
        %v461 = vld [vmem:[%s298 + $0x190] sm:$0xff]
        %v462 = vld [vmem:[%s298 + $0x198] sm:$0xff]
        %v463 = vld [vmem:[%s298 + $0x1a0] sm:$0xff]
        %v464 = vld [vmem:[%s298 + $0x1a8] sm:$0xff]
        %v465 = vld [vmem:[%s298 + $0x1b0] sm:$0xff]
        %v466 = vld [vmem:[%s298 + $0x1b8] sm:$0xff]
        %v467 = vld [vmem:[%s298 + $0x1c0] sm:$0xff]
        %v468 = vld [vmem:[%s298 + $0x1c8] sm:$0xff]
        %v469 = vld [vmem:[%s298 + $0x1d0] sm:$0xff]
        %v470 = vld [vmem:[%s298 + $0x1d8] sm:$0xff]
        %v471 = vld [vmem:[%s298 + $0x1e0] sm:$0xff]
        %v472 = vld [vmem:[%s298 + $0x1e8] sm:$0xff]
        %v473 = vld [vmem:[%s298 + $0x1f0] sm:$0xff]
        %v474 = vld [vmem:[%s298 + $0x1f8] sm:$0xff]
        %v475 = vunpack.c.l.bf16 %v411
        %v476 = vunpack.c.h.bf16 %v411
        %v477 = vunpack.c.l.bf16 %v412
        %v478 = vunpack.c.h.bf16 %v412
        %v479 = vunpack.c.l.bf16 %v413
        %v480 = vunpack.c.h.bf16 %v413
        %v481 = vunpack.c.l.bf16 %v414
        %v482 = vunpack.c.h.bf16 %v414
        %v483 = vunpack.c.l.bf16 %v415
        %v484 = vunpack.c.h.bf16 %v415
        %v485 = vunpack.c.l.bf16 %v416
        %v486 = vunpack.c.h.bf16 %v416
        %v487 = vunpack.c.l.bf16 %v417
        %v488 = vunpack.c.h.bf16 %v417
        %v489 = vunpack.c.l.bf16 %v418
        %v490 = vunpack.c.h.bf16 %v418
        %v491 = vunpack.c.l.bf16 %v419
        %v492 = vunpack.c.h.bf16 %v419
        %v493 = vunpack.c.l.bf16 %v420
        %v494 = vunpack.c.h.bf16 %v420
        %v495 = vunpack.c.l.bf16 %v421
        %v496 = vunpack.c.h.bf16 %v421
        %v497 = vunpack.c.l.bf16 %v422
        %v498 = vunpack.c.h.bf16 %v422
        %v499 = vunpack.c.l.bf16 %v423
        %v500 = vunpack.c.h.bf16 %v423
        %v501 = vunpack.c.l.bf16 %v424
        %v502 = vunpack.c.h.bf16 %v424
        %v503 = vunpack.c.l.bf16 %v425
        %v504 = vunpack.c.h.bf16 %v425
        %v505 = vunpack.c.l.bf16 %v426
        %v506 = vunpack.c.h.bf16 %v426
        %v507 = vunpack.c.l.bf16 %v427
        %v508 = vunpack.c.h.bf16 %v427
        %v509 = vunpack.c.l.bf16 %v428
        %v510 = vunpack.c.h.bf16 %v428
        %v511 = vunpack.c.l.bf16 %v429
        %v512 = vunpack.c.h.bf16 %v429
        %v513 = vunpack.c.l.bf16 %v430
        %v514 = vunpack.c.h.bf16 %v430
        %v515 = vunpack.c.l.bf16 %v431
        %v516 = vunpack.c.h.bf16 %v431
        %v517 = vunpack.c.l.bf16 %v432
        %v518 = vunpack.c.h.bf16 %v432
        %v519 = vunpack.c.l.bf16 %v433
        %v520 = vunpack.c.h.bf16 %v433
        %v521 = vunpack.c.l.bf16 %v434
        %v522 = vunpack.c.h.bf16 %v434
        %v523 = vunpack.c.l.bf16 %v435
        %v524 = vunpack.c.h.bf16 %v435
        %v525 = vunpack.c.l.bf16 %v436
        %v526 = vunpack.c.h.bf16 %v436
        %v527 = vunpack.c.l.bf16 %v437
        %v528 = vunpack.c.h.bf16 %v437
        %v529 = vunpack.c.l.bf16 %v438
        %v530 = vunpack.c.h.bf16 %v438
        %v531 = vunpack.c.l.bf16 %v439
        %v532 = vunpack.c.h.bf16 %v439
        %v533 = vunpack.c.l.bf16 %v440
        %v534 = vunpack.c.h.bf16 %v440
        %v535 = vunpack.c.l.bf16 %v441
        %v536 = vunpack.c.h.bf16 %v441
        %v537 = vunpack.c.l.bf16 %v442
        %v538 = vunpack.c.h.bf16 %v442
        %v539 = vunpack.c.l.bf16 %v443
        %v540 = vunpack.c.h.bf16 %v443
        %v541 = vunpack.c.l.bf16 %v444
        %v542 = vunpack.c.h.bf16 %v444
        %v543 = vunpack.c.l.bf16 %v445
        %v544 = vunpack.c.h.bf16 %v445
        %v545 = vunpack.c.l.bf16 %v446
        %v546 = vunpack.c.h.bf16 %v446
        %v547 = vunpack.c.l.bf16 %v447
        %v548 = vunpack.c.h.bf16 %v447
        %v549 = vunpack.c.l.bf16 %v448
        %v550 = vunpack.c.h.bf16 %v448
        %v551 = vunpack.c.l.bf16 %v449
        %v552 = vunpack.c.h.bf16 %v449
        %v553 = vunpack.c.l.bf16 %v450
        %v554 = vunpack.c.h.bf16 %v450
        %v555 = vunpack.c.l.bf16 %v451
        %v556 = vunpack.c.h.bf16 %v451
        %v557 = vunpack.c.l.bf16 %v452
        %v558 = vunpack.c.h.bf16 %v452
        %v559 = vunpack.c.l.bf16 %v453
        %v560 = vunpack.c.h.bf16 %v453
        %v561 = vunpack.c.l.bf16 %v454
        %v562 = vunpack.c.h.bf16 %v454
        %v563 = vunpack.c.l.bf16 %v455
        %v564 = vunpack.c.h.bf16 %v455
        %v565 = vunpack.c.l.bf16 %v456
        %v566 = vunpack.c.h.bf16 %v456
        %v567 = vunpack.c.l.bf16 %v457
        %v568 = vunpack.c.h.bf16 %v457
        %v569 = vunpack.c.l.bf16 %v458
        %v570 = vunpack.c.h.bf16 %v458
        %v571 = vunpack.c.l.bf16 %v459
        %v572 = vunpack.c.h.bf16 %v459
        %v573 = vunpack.c.l.bf16 %v460
        %v574 = vunpack.c.h.bf16 %v460
        %v575 = vunpack.c.l.bf16 %v461
        %v576 = vunpack.c.h.bf16 %v461
        %v577 = vunpack.c.l.bf16 %v462
        %v578 = vunpack.c.h.bf16 %v462
        %v579 = vunpack.c.l.bf16 %v463
        %v580 = vunpack.c.h.bf16 %v463
        %v581 = vunpack.c.l.bf16 %v464
        %v582 = vunpack.c.h.bf16 %v464
        %v583 = vunpack.c.l.bf16 %v465
        %v584 = vunpack.c.h.bf16 %v465
        %v585 = vunpack.c.l.bf16 %v466
        %v586 = vunpack.c.h.bf16 %v466
        %v587 = vunpack.c.l.bf16 %v467
        %v588 = vunpack.c.h.bf16 %v467
        %v589 = vunpack.c.l.bf16 %v468
        %v590 = vunpack.c.h.bf16 %v468
        %v591 = vunpack.c.l.bf16 %v469
        %v592 = vunpack.c.h.bf16 %v469
        %v593 = vunpack.c.l.bf16 %v470
        %v594 = vunpack.c.h.bf16 %v470
        %v595 = vunpack.c.l.bf16 %v471
        %v596 = vunpack.c.h.bf16 %v471
        %v597 = vunpack.c.l.bf16 %v472
        %v598 = vunpack.c.h.bf16 %v472
        %v599 = vunpack.c.l.bf16 %v473
        %v600 = vunpack.c.h.bf16 %v473
        %v601 = vunpack.c.l.bf16 %v474
        %v602 = vunpack.c.h.bf16 %v474
        %v603 = vld [vmem:[#allocation6] sm:$0xff]
        %v604 = vld [vmem:[#allocation6 + $0x8] sm:$0xff]
        %v605 = vld [vmem:[#allocation6 + $0x10] sm:$0xff]
        %v606 = vld [vmem:[#allocation6 + $0x18] sm:$0xff]
        %v607 = vld [vmem:[#allocation6 + $0x20] sm:$0xff]
        %v608 = vld [vmem:[#allocation6 + $0x28] sm:$0xff]
        %v609 = vld [vmem:[#allocation6 + $0x30] sm:$0xff]
        %v610 = vld [vmem:[#allocation6 + $0x38] sm:$0xff]
        %v611 = vld [vmem:[#allocation6 + $0x40] sm:$0xff]
        %v612 = vld [vmem:[#allocation6 + $0x48] sm:$0xff]
        %v613 = vld [vmem:[#allocation6 + $0x50] sm:$0xff]
        %v614 = vld [vmem:[#allocation6 + $0x58] sm:$0xff]
        %v615 = vld [vmem:[#allocation6 + $0x60] sm:$0xff]
        %v616 = vld [vmem:[#allocation6 + $0x68] sm:$0xff]
        %v617 = vld [vmem:[#allocation6 + $0x70] sm:$0xff]
        %v618 = vld [vmem:[#allocation6 + $0x78] sm:$0xff]
        %v619 = vld [vmem:[#allocation6 + $0x80] sm:$0xff]
        %v620 = vld [vmem:[#allocation6 + $0x88] sm:$0xff]
        %v621 = vld [vmem:[#allocation6 + $0x90] sm:$0xff]
        %v622 = vld [vmem:[#allocation6 + $0x98] sm:$0xff]
        %v623 = vld [vmem:[#allocation6 + $0xa0] sm:$0xff]
        %v624 = vld [vmem:[#allocation6 + $0xa8] sm:$0xff]
        %v625 = vld [vmem:[#allocation6 + $0xb0] sm:$0xff]
        %v626 = vld [vmem:[#allocation6 + $0xb8] sm:$0xff]
        %v627 = vld [vmem:[#allocation6 + $0xc0] sm:$0xff]
        %v628 = vld [vmem:[#allocation6 + $0xc8] sm:$0xff]
        %v629 = vld [vmem:[#allocation6 + $0xd0] sm:$0xff]
        %v630 = vld [vmem:[#allocation6 + $0xd8] sm:$0xff]
        %v631 = vld [vmem:[#allocation6 + $0xe0] sm:$0xff]
        %v632 = vld [vmem:[#allocation6 + $0xe8] sm:$0xff]
        %v633 = vld [vmem:[#allocation6 + $0xf0] sm:$0xff]
        %v634 = vld [vmem:[#allocation6 + $0xf8] sm:$0xff]
        %v635 = vld [vmem:[#allocation6 + $0x100] sm:$0xff]
        %v636 = vld [vmem:[#allocation6 + $0x108] sm:$0xff]
        %v637 = vld [vmem:[#allocation6 + $0x110] sm:$0xff]
        %v638 = vld [vmem:[#allocation6 + $0x118] sm:$0xff]
        %v639 = vld [vmem:[#allocation6 + $0x120] sm:$0xff]
        %v640 = vld [vmem:[#allocation6 + $0x128] sm:$0xff]
        %v641 = vld [vmem:[#allocation6 + $0x130] sm:$0xff]
        %v642 = vld [vmem:[#allocation6 + $0x138] sm:$0xff]
        %v643 = vld [vmem:[#allocation6 + $0x140] sm:$0xff]
        %v644 = vld [vmem:[#allocation6 + $0x148] sm:$0xff]
        %v645 = vld [vmem:[#allocation6 + $0x150] sm:$0xff]
        %v646 = vld [vmem:[#allocation6 + $0x158] sm:$0xff]
        %v647 = vld [vmem:[#allocation6 + $0x160] sm:$0xff]
        %v648 = vld [vmem:[#allocation6 + $0x168] sm:$0xff]
        %v649 = vld [vmem:[#allocation6 + $0x170] sm:$0xff]
        %v650 = vld [vmem:[#allocation6 + $0x178] sm:$0xff]
        %v651 = vld [vmem:[#allocation6 + $0x180] sm:$0xff]
        %v652 = vld [vmem:[#allocation6 + $0x188] sm:$0xff]
        %v653 = vld [vmem:[#allocation6 + $0x190] sm:$0xff]
        %v654 = vld [vmem:[#allocation6 + $0x198] sm:$0xff]
        %v655 = vld [vmem:[#allocation6 + $0x1a0] sm:$0xff]
        %v656 = vld [vmem:[#allocation6 + $0x1a8] sm:$0xff]
        %v657 = vld [vmem:[#allocation6 + $0x1b0] sm:$0xff]
        %v658 = vld [vmem:[#allocation6 + $0x1b8] sm:$0xff]
        %v659 = vld [vmem:[#allocation6 + $0x1c0] sm:$0xff]
        %v660 = vld [vmem:[#allocation6 + $0x1c8] sm:$0xff]
        %v661 = vld [vmem:[#allocation6 + $0x1d0] sm:$0xff]
        %v662 = vld [vmem:[#allocation6 + $0x1d8] sm:$0xff]
        %v663 = vld [vmem:[#allocation6 + $0x1e0] sm:$0xff]
        %v664 = vld [vmem:[#allocation6 + $0x1e8] sm:$0xff]
        %v665 = vld [vmem:[#allocation6 + $0x1f0] sm:$0xff]
        %v666 = vld [vmem:[#allocation6 + $0x1f8] sm:$0xff]
        %667 = vmatprep.subr.mxu0 0.0
        %668 = vmatpush1.msra.mxu0 %v603
        %669 = vmatprep.subr.mxu0 0.0
        %670 = vmatpush1.msra.mxu0 %v604
        %671 = vmatprep.subr.mxu0 0.0
        %672 = vmatpush1.msra.mxu0 %v605
        %673 = vmatprep.subr.mxu0 0.0
        %674 = vmatpush1.msra.mxu0 %v606
        %675 = vmatprep.subr.mxu0 0.0
        %676 = vmatpush1.msra.mxu0 %v607
        %677 = vmatprep.subr.mxu0 0.0
        %678 = vmatpush1.msra.mxu0 %v608
        %679 = vmatprep.subr.mxu0 0.0
        %680 = vmatpush1.msra.mxu0 %v609
        %681 = vmatprep.subr.mxu0 0.0
        %682 = vmatpush1.msra.mxu0 %v610
        %683 = vmatprep.subr.mxu0 0.0
        %684 = vmatpush1.msra.mxu0 %v611
        %685 = vmatprep.subr.mxu0 0.0
        %686 = vmatpush1.msra.mxu0 %v612
        %687 = vmatprep.subr.mxu0 0.0
        %688 = vmatpush1.msra.mxu0 %v613
        %689 = vmatprep.subr.mxu0 0.0
        %690 = vmatpush1.msra.mxu0 %v614
        %691 = vmatprep.subr.mxu0 0.0
        %692 = vmatpush1.msra.mxu0 %v615
        %693 = vmatprep.subr.mxu0 0.0
        %694 = vmatpush1.msra.mxu0 %v616
        %695 = vmatprep.subr.mxu0 0.0
        %696 = vmatpush1.msra.mxu0 %v617
        %697 = vmatprep.subr.mxu0 0.0
        %698 = vmatpush1.msra.mxu0 %v618
        %699 = vmatprep.subr.mxu0 0.0
        %700 = vmatpush1.msra.mxu0 %v619
        %701 = vmatprep.subr.mxu0 0.0
        %702 = vmatpush1.msra.mxu0 %v620
        %703 = vmatprep.subr.mxu0 0.0
        %704 = vmatpush1.msra.mxu0 %v621
        %705 = vmatprep.subr.mxu0 0.0
        %706 = vmatpush1.msra.mxu0 %v622
        %707 = vmatprep.subr.mxu0 0.0
        %708 = vmatpush1.msra.mxu0 %v623
        %709 = vmatprep.subr.mxu0 0.0
        %710 = vmatpush1.msra.mxu0 %v624
        %711 = vmatprep.subr.mxu0 0.0
        %712 = vmatpush1.msra.mxu0 %v625
        %713 = vmatprep.subr.mxu0 0.0
        %714 = vmatpush1.msra.mxu0 %v626
        %715 = vmatprep.subr.mxu0 0.0
        %716 = vmatpush1.msra.mxu0 %v627
        %717 = vmatprep.subr.mxu0 0.0
        %718 = vmatpush1.msra.mxu0 %v628
        %719 = vmatprep.subr.mxu0 0.0
        %720 = vmatpush1.msra.mxu0 %v629
        %721 = vmatprep.subr.mxu0 0.0
        %722 = vmatpush1.msra.mxu0 %v630
        %723 = vmatprep.subr.mxu0 0.0
        %724 = vmatpush1.msra.mxu0 %v631
        %725 = vmatprep.subr.mxu0 0.0
        %726 = vmatpush1.msra.mxu0 %v632
        %727 = vmatprep.subr.mxu0 0.0
        %728 = vmatpush1.msra.mxu0 %v633
        %729 = vmatprep.subr.mxu0 0.0
        %730 = vmatpush1.msra.mxu0 %v634
        %731 = vmatprep.mubr.f32.mxu0 %v476
        %732 = vmatmul.mubr.f32.gmra.mrb[0].mxu0 %v475
        %v733 = vpop.f32.mrb[0].mxu0
        %v734 = vadd.f32 0.0, %v733
        %v735 = vpop.f32.mrb[0].mxu0
        %736 = vmatprep.mubr.f32.mxu0 %v480
        %737 = vmatmul.mubr.f32.gmra.mrb[0].mxu0 %v479
        %v738 = vpop.f32.mrb[0].mxu0
        %v739 = vadd.f32 0.0, %v738
        %v740 = vpop.f32.mrb[0].mxu0
        %741 = vmatprep.mubr.f32.mxu0 %v484
        %742 = vmatmul.mubr.f32.gmra.mrb[0].mxu0 %v483
        %v743 = vpop.f32.mrb[0].mxu0
        %v744 = vadd.f32 0.0, %v743
        %v745 = vpop.f32.mrb[0].mxu0
        %746 = vmatprep.mubr.f32.mxu0 %v488
        %747 = vmatmul.mubr.f32.gmra.mrb[0].mxu0 %v487
        %v748 = vpop.f32.mrb[0].mxu0
        %v749 = vadd.f32 0.0, %v748
        %v750 = vpop.f32.mrb[0].mxu0
        %751 = vmatprep.mubr.f32.mxu0 %v492
        %752 = vmatmul.mubr.f32.gmra.mrb[0].mxu0 %v491
        %v753 = vpop.f32.mrb[0].mxu0
        %v754 = vadd.f32 0.0, %v753
        %v755 = vpop.f32.mrb[0].mxu0
        %756 = vmatprep.mubr.f32.mxu0 %v496
        %757 = vmatmul.mubr.f32.gmra.mrb[0].mxu0 %v495
        %v758 = vpop.f32.mrb[0].mxu0
        %v759 = vadd.f32 0.0, %v758
        %v760 = vpop.f32.mrb[0].mxu0
        %761 = vmatprep.mubr.f32.mxu0 %v500
        %762 = vmatmul.mubr.f32.gmra.mrb[0].mxu0 %v499
        %v763 = vpop.f32.mrb[0].mxu0
        %v764 = vadd.f32 0.0, %v763
        %v765 = vpop.f32.mrb[0].mxu0
        %766 = vmatprep.mubr.f32.mxu0 %v504
        %767 = vmatmul.mubr.f32.gmra.mrb[0].mxu0 %v503
        %v768 = vpop.f32.mrb[0].mxu0
        %v769 = vadd.f32 0.0, %v768
        %v770 = vpop.f32.mrb[0].mxu0
        %771 = vmatprep.mubr.f32.mxu0 %v508
        %772 = vmatmul.mubr.f32.gmra.mrb[0].mxu0 %v507
        %v773 = vpop.f32.mrb[0].mxu0
        %v774 = vadd.f32 0.0, %v773
        %v775 = vpop.f32.mrb[0].mxu0
        %776 = vmatprep.mubr.f32.mxu0 %v512
        %777 = vmatmul.mubr.f32.gmra.mrb[0].mxu0 %v511
        %v778 = vpop.f32.mrb[0].mxu0
        %v779 = vadd.f32 0.0, %v778
        %v780 = vpop.f32.mrb[0].mxu0
        %781 = vmatprep.mubr.f32.mxu0 %v516
        %782 = vmatmul.mubr.f32.gmra.mrb[0].mxu0 %v515
        %v783 = vpop.f32.mrb[0].mxu0
        %v784 = vadd.f32 0.0, %v783
        %v785 = vpop.f32.mrb[0].mxu0
        %786 = vmatprep.mubr.f32.mxu0 %v520
        %787 = vmatmul.mubr.f32.gmra.mrb[0].mxu0 %v519
        %v788 = vpop.f32.mrb[0].mxu0
        %v789 = vadd.f32 0.0, %v788
        %v790 = vpop.f32.mrb[0].mxu0
        %791 = vmatprep.mubr.f32.mxu0 %v524
        %792 = vmatmul.mubr.f32.gmra.mrb[0].mxu0 %v523
        %v793 = vpop.f32.mrb[0].mxu0
        %v794 = vadd.f32 0.0, %v793
        %v795 = vpop.f32.mrb[0].mxu0
        %796 = vmatprep.mubr.f32.mxu0 %v528
        %797 = vmatmul.mubr.f32.gmra.mrb[0].mxu0 %v527
        %v798 = vpop.f32.mrb[0].mxu0
        %v799 = vadd.f32 0.0, %v798
        %v800 = vpop.f32.mrb[0].mxu0
        %801 = vmatprep.mubr.f32.mxu0 %v532
        %802 = vmatmul.mubr.f32.gmra.mrb[0].mxu0 %v531
        %v803 = vpop.f32.mrb[0].mxu0
        %v804 = vadd.f32 0.0, %v803
        %v805 = vpop.f32.mrb[0].mxu0
        %806 = vmatprep.mubr.f32.mxu0 %v536
        %807 = vmatmul.mubr.f32.gmra.mrb[0].mxu0 %v535
        %v808 = vpop.f32.mrb[0].mxu0
        %v809 = vadd.f32 0.0, %v808
        %v810 = vpop.f32.mrb[0].mxu0
        %811 = vmatprep.mubr.f32.mxu0 %v540
        %812 = vmatmul.mubr.f32.gmra.mrb[0].mxu0 %v539
        %v813 = vpop.f32.mrb[0].mxu0
        %v814 = vadd.f32 0.0, %v813
        %v815 = vpop.f32.mrb[0].mxu0
        %816 = vmatprep.mubr.f32.mxu0 %v544
        %817 = vmatmul.mubr.f32.gmra.mrb[0].mxu0 %v543
        %v818 = vpop.f32.mrb[0].mxu0
        %v819 = vadd.f32 0.0, %v818
        %v820 = vpop.f32.mrb[0].mxu0
        %821 = vmatprep.mubr.f32.mxu0 %v548
        %822 = vmatmul.mubr.f32.gmra.mrb[0].mxu0 %v547
        %v823 = vpop.f32.mrb[0].mxu0
        %v824 = vadd.f32 0.0, %v823
        %v825 = vpop.f32.mrb[0].mxu0
        %826 = vmatprep.mubr.f32.mxu0 %v552
        %827 = vmatmul.mubr.f32.gmra.mrb[0].mxu0 %v551
        %v828 = vpop.f32.mrb[0].mxu0
        %v829 = vadd.f32 0.0, %v828
        %v830 = vpop.f32.mrb[0].mxu0
        %831 = vmatprep.mubr.f32.mxu0 %v556
        %832 = vmatmul.mubr.f32.gmra.mrb[0].mxu0 %v555
        %v833 = vpop.f32.mrb[0].mxu0
        %v834 = vadd.f32 0.0, %v833
        %v835 = vpop.f32.mrb[0].mxu0
        %836 = vmatprep.mubr.f32.mxu0 %v560
        %837 = vmatmul.mubr.f32.gmra.mrb[0].mxu0 %v559
        %v838 = vpop.f32.mrb[0].mxu0
        %v839 = vadd.f32 0.0, %v838
        %v840 = vpop.f32.mrb[0].mxu0
        %841 = vmatprep.mubr.f32.mxu0 %v564
        %842 = vmatmul.mubr.f32.gmra.mrb[0].mxu0 %v563
        %v843 = vpop.f32.mrb[0].mxu0
        %v844 = vadd.f32 0.0, %v843
        %v845 = vpop.f32.mrb[0].mxu0
        %846 = vmatprep.mubr.f32.mxu0 %v568
        %847 = vmatmul.mubr.f32.gmra.mrb[0].mxu0 %v567
        %v848 = vpop.f32.mrb[0].mxu0
        %v849 = vadd.f32 0.0, %v848
        %v850 = vpop.f32.mrb[0].mxu0
        %851 = vmatprep.mubr.f32.mxu0 %v572
        %852 = vmatmul.mubr.f32.gmra.mrb[0].mxu0 %v571
        %v853 = vpop.f32.mrb[0].mxu0
        %v854 = vadd.f32 0.0, %v853
        %v855 = vpop.f32.mrb[0].mxu0
        %856 = vmatprep.mubr.f32.mxu0 %v576
        %857 = vmatmul.mubr.f32.gmra.mrb[0].mxu0 %v575
        %v858 = vpop.f32.mrb[0].mxu0
        %v859 = vadd.f32 0.0, %v858
        %v860 = vpop.f32.mrb[0].mxu0
        %861 = vmatprep.mubr.f32.mxu0 %v580
        %862 = vmatmul.mubr.f32.gmra.mrb[0].mxu0 %v579
        %v863 = vpop.f32.mrb[0].mxu0
        %v864 = vadd.f32 0.0, %v863
        %v865 = vpop.f32.mrb[0].mxu0
        %866 = vmatprep.mubr.f32.mxu0 %v584
        %867 = vmatmul.mubr.f32.gmra.mrb[0].mxu0 %v583
        %v868 = vpop.f32.mrb[0].mxu0
        %v869 = vadd.f32 0.0, %v868
        %v870 = vpop.f32.mrb[0].mxu0
        %871 = vmatprep.mubr.f32.mxu0 %v588
        %872 = vmatmul.mubr.f32.gmra.mrb[0].mxu0 %v587
        %v873 = vpop.f32.mrb[0].mxu0
        %v874 = vadd.f32 0.0, %v873
        %v875 = vpop.f32.mrb[0].mxu0
        %876 = vmatprep.mubr.f32.mxu0 %v592
        %877 = vmatmul.mubr.f32.gmra.mrb[0].mxu0 %v591
        %v878 = vpop.f32.mrb[0].mxu0
        %v879 = vadd.f32 0.0, %v878
        %v880 = vpop.f32.mrb[0].mxu0
        %881 = vmatprep.mubr.f32.mxu0 %v596
        %882 = vmatmul.mubr.f32.gmra.mrb[0].mxu0 %v595
        %v883 = vpop.f32.mrb[0].mxu0
        %v884 = vadd.f32 0.0, %v883
        %v885 = vpop.f32.mrb[0].mxu0
        %886 = vmatprep.mubr.f32.mxu0 %v600
        %887 = vmatmul.mubr.f32.gmra.mrb[0].mxu0 %v599
        %v888 = vpop.f32.mrb[0].mxu0
        %v889 = vadd.f32 0.0, %v888
        %v890 = vpop.f32.mrb[0].mxu0
        %891 = vdwg.mxu0
        %892 = vmatprep.subr.mxu0 0.0
        %893 = vmatpush1.msra.mxu0 %v635
        %894 = vmatprep.subr.mxu0 0.0
        %895 = vmatpush1.msra.mxu0 %v636
        %896 = vmatprep.subr.mxu0 0.0
        %897 = vmatpush1.msra.mxu0 %v637
        %898 = vmatprep.subr.mxu0 0.0
        %899 = vmatpush1.msra.mxu0 %v638
        %900 = vmatprep.subr.mxu0 0.0
        %901 = vmatpush1.msra.mxu0 %v639
        %902 = vmatprep.subr.mxu0 0.0
        %903 = vmatpush1.msra.mxu0 %v640
        %904 = vmatprep.subr.mxu0 0.0
        %905 = vmatpush1.msra.mxu0 %v641
        %906 = vmatprep.subr.mxu0 0.0
        %907 = vmatpush1.msra.mxu0 %v642
        %908 = vmatprep.subr.mxu0 0.0
        %909 = vmatpush1.msra.mxu0 %v643
        %910 = vmatprep.subr.mxu0 0.0
        %911 = vmatpush1.msra.mxu0 %v644
        %912 = vmatprep.subr.mxu0 0.0
        %913 = vmatpush1.msra.mxu0 %v645
        %914 = vmatprep.subr.mxu0 0.0
        %915 = vmatpush1.msra.mxu0 %v646
        %916 = vmatprep.subr.mxu0 0.0
        %917 = vmatpush1.msra.mxu0 %v647
        %918 = vmatprep.subr.mxu0 0.0
        %919 = vmatpush1.msra.mxu0 %v648
        %920 = vmatprep.subr.mxu0 0.0
        %921 = vmatpush1.msra.mxu0 %v649
        %922 = vmatprep.subr.mxu0 0.0
        %923 = vmatpush1.msra.mxu0 %v650
        %924 = vmatprep.subr.mxu0 0.0
        %925 = vmatpush1.msra.mxu0 %v651
        %926 = vmatprep.subr.mxu0 0.0
        %927 = vmatpush1.msra.mxu0 %v652
        %928 = vmatprep.subr.mxu0 0.0
        %929 = vmatpush1.msra.mxu0 %v653
        %930 = vmatprep.subr.mxu0 0.0
        %931 = vmatpush1.msra.mxu0 %v654
        %932 = vmatprep.subr.mxu0 0.0
        %933 = vmatpush1.msra.mxu0 %v655
        %934 = vmatprep.subr.mxu0 0.0
        %935 = vmatpush1.msra.mxu0 %v656
        %936 = vmatprep.subr.mxu0 0.0
        %937 = vmatpush1.msra.mxu0 %v657
        %938 = vmatprep.subr.mxu0 0.0
        %939 = vmatpush1.msra.mxu0 %v658
        %940 = vmatprep.subr.mxu0 0.0
        %941 = vmatpush1.msra.mxu0 %v659
        %942 = vmatprep.subr.mxu0 0.0
        %943 = vmatpush1.msra.mxu0 %v660
        %944 = vmatprep.subr.mxu0 0.0
        %945 = vmatpush1.msra.mxu0 %v661
        %946 = vmatprep.subr.mxu0 0.0
        %947 = vmatpush1.msra.mxu0 %v662
        %948 = vmatprep.subr.mxu0 0.0
        %949 = vmatpush1.msra.mxu0 %v663
        %950 = vmatprep.subr.mxu0 0.0
        %951 = vmatpush1.msra.mxu0 %v664
        %952 = vmatprep.subr.mxu0 0.0
        %953 = vmatpush1.msra.mxu0 %v665
        %954 = vmatprep.subr.mxu0 0.0
        %955 = vmatpush1.msra.mxu0 %v666
        %956 = vmatprep.mubr.f32.mxu0 %v478
        %957 = vmatmul.mubr.f32.gmra.mrb[0].mxu0 %v477
        %v958 = vpop.f32.mrb[0].mxu0
        %v959 = vadd.f32 %v734, %v958
        %v960 = vpop.f32.mrb[0].mxu0
        %961 = vmatprep.mubr.f32.mxu0 %v482
        %962 = vmatmul.mubr.f32.gmra.mrb[0].mxu0 %v481
        %v963 = vpop.f32.mrb[0].mxu0
        %v964 = vadd.f32 %v739, %v963
        %v965 = vpop.f32.mrb[0].mxu0
        %966 = vmatprep.mubr.f32.mxu0 %v486
        %967 = vmatmul.mubr.f32.gmra.mrb[0].mxu0 %v485
        %v968 = vpop.f32.mrb[0].mxu0
        %v969 = vadd.f32 %v744, %v968
        %v970 = vpop.f32.mrb[0].mxu0
        %971 = vmatprep.mubr.f32.mxu0 %v490
        %972 = vmatmul.mubr.f32.gmra.mrb[0].mxu0 %v489
        %v973 = vpop.f32.mrb[0].mxu0
        %v974 = vadd.f32 %v749, %v973
        %v975 = vpop.f32.mrb[0].mxu0
        %976 = vmatprep.mubr.f32.mxu0 %v494
        %977 = vmatmul.mubr.f32.gmra.mrb[0].mxu0 %v493
        %v978 = vpop.f32.mrb[0].mxu0
        %v979 = vadd.f32 %v754, %v978
        %v980 = vpop.f32.mrb[0].mxu0
        %981 = vmatprep.mubr.f32.mxu0 %v498
        %982 = vmatmul.mubr.f32.gmra.mrb[0].mxu0 %v497
        %v983 = vpop.f32.mrb[0].mxu0
        %v984 = vadd.f32 %v759, %v983
        %v985 = vpop.f32.mrb[0].mxu0
        %986 = vmatprep.mubr.f32.mxu0 %v502
        %987 = vmatmul.mubr.f32.gmra.mrb[0].mxu0 %v501
        %v988 = vpop.f32.mrb[0].mxu0
        %v989 = vadd.f32 %v764, %v988
        %v990 = vpop.f32.mrb[0].mxu0
        %991 = vmatprep.mubr.f32.mxu0 %v506
        %992 = vmatmul.mubr.f32.gmra.mrb[0].mxu0 %v505
        %v993 = vpop.f32.mrb[0].mxu0
        %v994 = vadd.f32 %v769, %v993
        %v995 = vpop.f32.mrb[0].mxu0
        %996 = vmatprep.mubr.f32.mxu0 %v510
        %997 = vmatmul.mubr.f32.gmra.mrb[0].mxu0 %v509
        %v998 = vpop.f32.mrb[0].mxu0
        %v999 = vadd.f32 %v774, %v998
        %v1000 = vpop.f32.mrb[0].mxu0
        %1001 = vmatprep.mubr.f32.mxu0 %v514
        %1002 = vmatmul.mubr.f32.gmra.mrb[0].mxu0 %v513
        %v1003 = vpop.f32.mrb[0].mxu0
        %v1004 = vadd.f32 %v779, %v1003
        %v1005 = vpop.f32.mrb[0].mxu0
        %1006 = vmatprep.mubr.f32.mxu0 %v518
        %1007 = vmatmul.mubr.f32.gmra.mrb[0].mxu0 %v517
        %v1008 = vpop.f32.mrb[0].mxu0
        %v1009 = vadd.f32 %v784, %v1008
        %v1010 = vpop.f32.mrb[0].mxu0
        %1011 = vmatprep.mubr.f32.mxu0 %v522
        %1012 = vmatmul.mubr.f32.gmra.mrb[0].mxu0 %v521
        %v1013 = vpop.f32.mrb[0].mxu0
        %v1014 = vadd.f32 %v789, %v1013
        %v1015 = vpop.f32.mrb[0].mxu0
        %1016 = vmatprep.mubr.f32.mxu0 %v526
        %1017 = vmatmul.mubr.f32.gmra.mrb[0].mxu0 %v525
        %v1018 = vpop.f32.mrb[0].mxu0
        %v1019 = vadd.f32 %v794, %v1018
        %v1020 = vpop.f32.mrb[0].mxu0
        %1021 = vmatprep.mubr.f32.mxu0 %v530
        %1022 = vmatmul.mubr.f32.gmra.mrb[0].mxu0 %v529
        %v1023 = vpop.f32.mrb[0].mxu0
        %v1024 = vadd.f32 %v799, %v1023
        %v1025 = vpop.f32.mrb[0].mxu0
        %1026 = vmatprep.mubr.f32.mxu0 %v534
        %1027 = vmatmul.mubr.f32.gmra.mrb[0].mxu0 %v533
        %v1028 = vpop.f32.mrb[0].mxu0
        %v1029 = vadd.f32 %v804, %v1028
        %v1030 = vpop.f32.mrb[0].mxu0
        %1031 = vmatprep.mubr.f32.mxu0 %v538
        %1032 = vmatmul.mubr.f32.gmra.mrb[0].mxu0 %v537
        %v1033 = vpop.f32.mrb[0].mxu0
        %v1034 = vadd.f32 %v809, %v1033
        %v1035 = vpop.f32.mrb[0].mxu0
        %1036 = vmatprep.mubr.f32.mxu0 %v542
        %1037 = vmatmul.mubr.f32.gmra.mrb[0].mxu0 %v541
        %v1038 = vpop.f32.mrb[0].mxu0
        %v1039 = vadd.f32 %v814, %v1038
        %v1040 = vpop.f32.mrb[0].mxu0
        %1041 = vmatprep.mubr.f32.mxu0 %v546
        %1042 = vmatmul.mubr.f32.gmra.mrb[0].mxu0 %v545
        %v1043 = vpop.f32.mrb[0].mxu0
        %v1044 = vadd.f32 %v819, %v1043
        %v1045 = vpop.f32.mrb[0].mxu0
        %1046 = vmatprep.mubr.f32.mxu0 %v550
        %1047 = vmatmul.mubr.f32.gmra.mrb[0].mxu0 %v549
        %v1048 = vpop.f32.mrb[0].mxu0
        %v1049 = vadd.f32 %v824, %v1048
        %v1050 = vpop.f32.mrb[0].mxu0
        %1051 = vmatprep.mubr.f32.mxu0 %v554
        %1052 = vmatmul.mubr.f32.gmra.mrb[0].mxu0 %v553
        %v1053 = vpop.f32.mrb[0].mxu0
        %v1054 = vadd.f32 %v829, %v1053
        %v1055 = vpop.f32.mrb[0].mxu0
        %1056 = vmatprep.mubr.f32.mxu0 %v558
        %1057 = vmatmul.mubr.f32.gmra.mrb[0].mxu0 %v557
        %v1058 = vpop.f32.mrb[0].mxu0
        %v1059 = vadd.f32 %v834, %v1058
        %v1060 = vpop.f32.mrb[0].mxu0
        %1061 = vmatprep.mubr.f32.mxu0 %v562
        %1062 = vmatmul.mubr.f32.gmra.mrb[0].mxu0 %v561
        %v1063 = vpop.f32.mrb[0].mxu0
        %v1064 = vadd.f32 %v839, %v1063
        %v1065 = vpop.f32.mrb[0].mxu0
        %1066 = vmatprep.mubr.f32.mxu0 %v566
        %1067 = vmatmul.mubr.f32.gmra.mrb[0].mxu0 %v565
        %v1068 = vpop.f32.mrb[0].mxu0
        %v1069 = vadd.f32 %v844, %v1068
        %v1070 = vpop.f32.mrb[0].mxu0
        %1071 = vmatprep.mubr.f32.mxu0 %v570
        %1072 = vmatmul.mubr.f32.gmra.mrb[0].mxu0 %v569
        %v1073 = vpop.f32.mrb[0].mxu0
        %v1074 = vadd.f32 %v849, %v1073
        %v1075 = vpop.f32.mrb[0].mxu0
        %1076 = vmatprep.mubr.f32.mxu0 %v574
        %1077 = vmatmul.mubr.f32.gmra.mrb[0].mxu0 %v573
        %v1078 = vpop.f32.mrb[0].mxu0
        %v1079 = vadd.f32 %v854, %v1078
        %v1080 = vpop.f32.mrb[0].mxu0
        %1081 = vmatprep.mubr.f32.mxu0 %v578
        %1082 = vmatmul.mubr.f32.gmra.mrb[0].mxu0 %v577
        %v1083 = vpop.f32.mrb[0].mxu0
        %v1084 = vadd.f32 %v859, %v1083
        %v1085 = vpop.f32.mrb[0].mxu0
        %1086 = vmatprep.mubr.f32.mxu0 %v582
        %1087 = vmatmul.mubr.f32.gmra.mrb[0].mxu0 %v581
        %v1088 = vpop.f32.mrb[0].mxu0
        %v1089 = vadd.f32 %v864, %v1088
        %v1090 = vpop.f32.mrb[0].mxu0
        %1091 = vmatprep.mubr.f32.mxu0 %v586
        %1092 = vmatmul.mubr.f32.gmra.mrb[0].mxu0 %v585
        %v1093 = vpop.f32.mrb[0].mxu0
        %v1094 = vadd.f32 %v869, %v1093
        %v1095 = vpop.f32.mrb[0].mxu0
        %1096 = vmatprep.mubr.f32.mxu0 %v590
        %1097 = vmatmul.mubr.f32.gmra.mrb[0].mxu0 %v589
        %v1098 = vpop.f32.mrb[0].mxu0
        %v1099 = vadd.f32 %v874, %v1098
        %v1100 = vpop.f32.mrb[0].mxu0
        %1101 = vmatprep.mubr.f32.mxu0 %v594
        %1102 = vmatmul.mubr.f32.gmra.mrb[0].mxu0 %v593
        %v1103 = vpop.f32.mrb[0].mxu0
        %v1104 = vadd.f32 %v879, %v1103
        %v1105 = vpop.f32.mrb[0].mxu0
        %1106 = vmatprep.mubr.f32.mxu0 %v598
        %1107 = vmatmul.mubr.f32.gmra.mrb[0].mxu0 %v597
        %v1108 = vpop.f32.mrb[0].mxu0
        %v1109 = vadd.f32 %v884, %v1108
        %v1110 = vpop.f32.mrb[0].mxu0
        %1111 = vmatprep.mubr.f32.mxu0 %v602
        %1112 = vmatmul.mubr.f32.gmra.mrb[0].mxu0 %v601
        %v1113 = vpop.f32.mrb[0].mxu0
        %v1114 = vadd.f32 %v889, %v1113
        %v1115 = vpop.f32.mrb[0].mxu0
        %1116 = vdwg.mxu0
        %v1117 = vadd.f32 %v379, %v959
        %v1118 = vadd.f32 %v380, %v964
        %v1119 = vadd.f32 %v381, %v969
        %v1120 = vadd.f32 %v382, %v974
        %v1121 = vadd.f32 %v383, %v979
        %v1122 = vadd.f32 %v384, %v984
        %v1123 = vadd.f32 %v385, %v989
        %v1124 = vadd.f32 %v386, %v994
        %v1125 = vadd.f32 %v387, %v999
        %v1126 = vadd.f32 %v388, %v1004
        %v1127 = vadd.f32 %v389, %v1009
        %v1128 = vadd.f32 %v390, %v1014
        %v1129 = vadd.f32 %v391, %v1019
        %v1130 = vadd.f32 %v392, %v1024
        %v1131 = vadd.f32 %v393, %v1029
        %v1132 = vadd.f32 %v394, %v1034
        %v1133 = vadd.f32 %v395, %v1039
        %v1134 = vadd.f32 %v396, %v1044
        %v1135 = vadd.f32 %v397, %v1049
        %v1136 = vadd.f32 %v398, %v1054
        %v1137 = vadd.f32 %v399, %v1059
        %v1138 = vadd.f32 %v400, %v1064
        %v1139 = vadd.f32 %v401, %v1069
        %v1140 = vadd.f32 %v402, %v1074
        %v1141 = vadd.f32 %v403, %v1079
        %v1142 = vadd.f32 %v404, %v1084
        %v1143 = vadd.f32 %v405, %v1089
        %v1144 = vadd.f32 %v406, %v1094
        %v1145 = vadd.f32 %v407, %v1099
        %v1146 = vadd.f32 %v408, %v1104
        %v1147 = vadd.f32 %v409, %v1109
        %v1148 = vadd.f32 %v410, %v1114
        %1149 = vst [vmem:[#allocation2] sm:$0xff] %v1117
        %1150 = vst [vmem:[#allocation2 + $0x8] sm:$0xff] %v1118
        %1151 = vst [vmem:[#allocation2 + $0x10] sm:$0xff] %v1119
        %1152 = vst [vmem:[#allocation2 + $0x18] sm:$0xff] %v1120
        %1153 = vst [vmem:[#allocation2 + $0x20] sm:$0xff] %v1121
        %1154 = vst [vmem:[#allocation2 + $0x28] sm:$0xff] %v1122
        %1155 = vst [vmem:[#allocation2 + $0x30] sm:$0xff] %v1123
        %1156 = vst [vmem:[#allocation2 + $0x38] sm:$0xff] %v1124
        %1157 = vst [vmem:[#allocation2 + $0x40] sm:$0xff] %v1125
        %1158 = vst [vmem:[#allocation2 + $0x48] sm:$0xff] %v1126
        %1159 = vst [vmem:[#allocation2 + $0x50] sm:$0xff] %v1127
        %1160 = vst [vmem:[#allocation2 + $0x58] sm:$0xff] %v1128
        %1161 = vst [vmem:[#allocation2 + $0x60] sm:$0xff] %v1129
        %1162 = vst [vmem:[#allocation2 + $0x68] sm:$0xff] %v1130
        %1163 = vst [vmem:[#allocation2 + $0x70] sm:$0xff] %v1131
        %1164 = vst [vmem:[#allocation2 + $0x78] sm:$0xff] %v1132
        %1165 = vst [vmem:[#allocation2 + $0x80] sm:$0xff] %v1133
        %1166 = vst [vmem:[#allocation2 + $0x88] sm:$0xff] %v1134
        %1167 = vst [vmem:[#allocation2 + $0x90] sm:$0xff] %v1135
        %1168 = vst [vmem:[#allocation2 + $0x98] sm:$0xff] %v1136
        %1169 = vst [vmem:[#allocation2 + $0xa0] sm:$0xff] %v1137
        %1170 = vst [vmem:[#allocation2 + $0xa8] sm:$0xff] %v1138
        %1171 = vst [vmem:[#allocation2 + $0xb0] sm:$0xff] %v1139
        %1172 = vst [vmem:[#allocation2 + $0xb8] sm:$0xff] %v1140
        %1173 = vst [vmem:[#allocation2 + $0xc0] sm:$0xff] %v1141
        %1174 = vst [vmem:[#allocation2 + $0xc8] sm:$0xff] %v1142
        %1175 = vst [vmem:[#allocation2 + $0xd0] sm:$0xff] %v1143
        %1176 = vst [vmem:[#allocation2 + $0xd8] sm:$0xff] %v1144
        %1177 = vst [vmem:[#allocation2 + $0xe0] sm:$0xff] %v1145
        %1178 = vst [vmem:[#allocation2 + $0xe8] sm:$0xff] %v1146
        %1179 = vst [vmem:[#allocation2 + $0xf0] sm:$0xff] %v1147
        %1180 = vst [vmem:[#allocation2 + $0xf8] sm:$0xff] %v1148
        // Predicated region
        $region65: #{tpu_custom_call.1} parent=43 // pred_check
          %p1181 = pneg %p343
        $region66: #{tpu_custom_call.1} parent=43 // pred_check_branch
          %1183 = sbr.rel (%p1181) target = $region68
        $region67: #{tpu_custom_call.1} parent=43 // pred_region
          %v1184 = vld [vmem:[#allocation2] sm:$0xff]
          %v1185 = vld [vmem:[#allocation2 + $0x8] sm:$0xff]
          %v1186 = vld [vmem:[#allocation2 + $0x10] sm:$0xff]
          %v1187 = vld [vmem:[#allocation2 + $0x18] sm:$0xff]
          %v1188 = vld [vmem:[#allocation2 + $0x20] sm:$0xff]
          %v1189 = vld [vmem:[#allocation2 + $0x28] sm:$0xff]
          %v1190 = vld [vmem:[#allocation2 + $0x30] sm:$0xff]
          %v1191 = vld [vmem:[#allocation2 + $0x38] sm:$0xff]
          %v1192 = vld [vmem:[#allocation2 + $0x40] sm:$0xff]
          %v1193 = vld [vmem:[#allocation2 + $0x48] sm:$0xff]
          %v1194 = vld [vmem:[#allocation2 + $0x50] sm:$0xff]
          %v1195 = vld [vmem:[#allocation2 + $0x58] sm:$0xff]
          %v1196 = vld [vmem:[#allocation2 + $0x60] sm:$0xff]
          %v1197 = vld [vmem:[#allocation2 + $0x68] sm:$0xff]
          %v1198 = vld [vmem:[#allocation2 + $0x70] sm:$0xff]
          %v1199 = vld [vmem:[#allocation2 + $0x78] sm:$0xff]
          %v1200 = vld [vmem:[#allocation2 + $0x80] sm:$0xff]
          %v1201 = vld [vmem:[#allocation2 + $0x88] sm:$0xff]
          %v1202 = vld [vmem:[#allocation2 + $0x90] sm:$0xff]
          %v1203 = vld [vmem:[#allocation2 + $0x98] sm:$0xff]
          %v1204 = vld [vmem:[#allocation2 + $0xa0] sm:$0xff]
          %v1205 = vld [vmem:[#allocation2 + $0xa8] sm:$0xff]
          %v1206 = vld [vmem:[#allocation2 + $0xb0] sm:$0xff]
          %v1207 = vld [vmem:[#allocation2 + $0xb8] sm:$0xff]
          %v1208 = vld [vmem:[#allocation2 + $0xc0] sm:$0xff]
          %v1209 = vld [vmem:[#allocation2 + $0xc8] sm:$0xff]
          %v1210 = vld [vmem:[#allocation2 + $0xd0] sm:$0xff]
          %v1211 = vld [vmem:[#allocation2 + $0xd8] sm:$0xff]
          %v1212 = vld [vmem:[#allocation2 + $0xe0] sm:$0xff]
          %v1213 = vld [vmem:[#allocation2 + $0xe8] sm:$0xff]
          %v1214 = vld [vmem:[#allocation2 + $0xf0] sm:$0xff]
          %v1215 = vld [vmem:[#allocation2 + $0xf8] sm:$0xff]
          %v1216 = vld [vmem:[#allocation8] sm:$0xff]
          %v1217 = vld [vmem:[#allocation8 + $0x8] sm:$0xff]
          %v1218 = vld [vmem:[#allocation8 + $0x10] sm:$0xff]
          %v1219 = vld [vmem:[#allocation8 + $0x18] sm:$0xff]
          %v1220 = vld [vmem:[#allocation8 + $0x20] sm:$0xff]
          %v1221 = vld [vmem:[#allocation8 + $0x28] sm:$0xff]
          %v1222 = vld [vmem:[#allocation8 + $0x30] sm:$0xff]
          %v1223 = vld [vmem:[#allocation8 + $0x38] sm:$0xff]
          %v1224 = vld [vmem:[#allocation8 + $0x40] sm:$0xff]
          %v1225 = vld [vmem:[#allocation8 + $0x48] sm:$0xff]
          %v1226 = vld [vmem:[#allocation8 + $0x50] sm:$0xff]
          %v1227 = vld [vmem:[#allocation8 + $0x58] sm:$0xff]
          %v1228 = vld [vmem:[#allocation8 + $0x60] sm:$0xff]
          %v1229 = vld [vmem:[#allocation8 + $0x68] sm:$0xff]
          %v1230 = vld [vmem:[#allocation8 + $0x70] sm:$0xff]
          %v1231 = vld [vmem:[#allocation8 + $0x78] sm:$0xff]
          %v1232 = vld [vmem:[%s3] sm:$0x1]
          %v1234 = vlaneseq
          %v1235 = vshrl.u32 %v1234, 7
          %v1236 = vsub.s32 0, %v1235
          %v1237 = vrot.slane %v1232, %v1236
          %1239 = vmatprep.subr.mxu0 0.0
          %1240 = vmatpush1.msra.mxu0 %v1216
          %1241 = vmatprep.subr.mxu0 0.0
          %1242 = vmatpush1.msra.mxu0 %v1217
          %1243 = vmatprep.subr.mxu0 0.0
          %1244 = vmatpush1.msra.mxu0 %v1218
          %1245 = vmatprep.subr.mxu0 0.0
          %1246 = vmatpush1.msra.mxu0 %v1219
          %1247 = vmatprep.subr.mxu0 0.0
          %1248 = vmatpush1.msra.mxu0 %v1220
          %1249 = vmatprep.subr.mxu0 0.0
          %1250 = vmatpush1.msra.mxu0 %v1221
          %1251 = vmatprep.subr.mxu0 0.0
          %1252 = vmatpush1.msra.mxu0 %v1222
          %1253 = vmatprep.subr.mxu0 0.0
          %1254 = vmatpush1.msra.mxu0 %v1223
          %1255 = vmatprep.subr.mxu0 0.0
          %1256 = vmatpush1.msra.mxu0 %v1224
          %1257 = vmatprep.subr.mxu0 0.0
          %1258 = vmatpush1.msra.mxu0 %v1225
          %1259 = vmatprep.subr.mxu0 0.0
          %1260 = vmatpush1.msra.mxu0 %v1226
          %1261 = vmatprep.subr.mxu0 0.0
          %1262 = vmatpush1.msra.mxu0 %v1227
          %1263 = vmatprep.subr.mxu0 0.0
          %1264 = vmatpush1.msra.mxu0 %v1228
          %1265 = vmatprep.subr.mxu0 0.0
          %1266 = vmatpush1.msra.mxu0 %v1229
          %1267 = vmatprep.subr.mxu0 0.0
          %1268 = vmatpush1.msra.mxu0 %v1230
          %1269 = vmatprep.subr.mxu0 0.0
          %1270 = vmatpush1.msra.mxu0 %v1231
          %1271 = vmatprep.subr.mxu0 0.0
          %1272 = vmatpush1.msra.mxu0 0.0
          %1273 = vmatprep.subr.mxu0 0.0
          %1274 = vmatpush1.msra.mxu0 0.0
          %1275 = vmatprep.subr.mxu0 0.0
          %1276 = vmatpush1.msra.mxu0 0.0
          %1277 = vmatprep.subr.mxu0 0.0
          %1278 = vmatpush1.msra.mxu0 0.0
          %1279 = vmatprep.subr.mxu0 0.0
          %1280 = vmatpush1.msra.mxu0 0.0
          %1281 = vmatprep.subr.mxu0 0.0
          %1282 = vmatpush1.msra.mxu0 0.0
          %1283 = vmatprep.subr.mxu0 0.0
          %1284 = vmatpush1.msra.mxu0 0.0
          %1285 = vmatprep.subr.mxu0 0.0
          %1286 = vmatpush1.msra.mxu0 0.0
          %1287 = vmatprep.subr.mxu0 0.0
          %1288 = vmatpush1.msra.mxu0 0.0
          %1289 = vmatprep.subr.mxu0 0.0
          %1290 = vmatpush1.msra.mxu0 0.0
          %1291 = vmatprep.subr.mxu0 0.0
          %1292 = vmatpush1.msra.mxu0 0.0
          %1293 = vmatprep.subr.mxu0 0.0
          %1294 = vmatpush1.msra.mxu0 0.0
          %1295 = vmatprep.subr.mxu0 0.0
          %1296 = vmatpush1.msra.mxu0 0.0
          %1297 = vmatprep.subr.mxu0 0.0
          %1298 = vmatpush1.msra.mxu0 0.0
          %1299 = vmatprep.subr.mxu0 0.0
          %1300 = vmatpush1.msra.mxu0 0.0
          %1301 = vmatprep.subr.mxu0 0.0
          %1302 = vmatpush1.msra.mxu0 0.0
          %1303 = vmatprep.mubr.f32.mxu0 0.0
          %1304 = vmatmul.mubr.f32.gmra.mrb[0].mxu0 %v1184
          %v1305 = vpop.f32.mrb[0].mxu0
          %v1306 = vadd.f32 %v1237, %v1305
          %v1307 = vpop.f32.mrb[0].mxu0
          %1308 = vmatprep.mubr.f32.mxu0 0.0
          %1309 = vmatmul.mubr.f32.gmra.mrb[0].mxu0 %v1185
          %v1310 = vpop.f32.mrb[0].mxu0
          %v1311 = vadd.f32 %v1237, %v1310
          %v1312 = vpop.f32.mrb[0].mxu0
          %1313 = vmatprep.mubr.f32.mxu0 0.0
          %1314 = vmatmul.mubr.f32.gmra.mrb[0].mxu0 %v1186
          %v1315 = vpop.f32.mrb[0].mxu0
          %v1316 = vadd.f32 %v1237, %v1315
          %v1317 = vpop.f32.mrb[0].mxu0
          %1318 = vmatprep.mubr.f32.mxu0 0.0
          %1319 = vmatmul.mubr.f32.gmra.mrb[0].mxu0 %v1187
          %v1320 = vpop.f32.mrb[0].mxu0
          %v1321 = vadd.f32 %v1237, %v1320
          %v1322 = vpop.f32.mrb[0].mxu0
          %1323 = vmatprep.mubr.f32.mxu0 0.0
          %1324 = vmatmul.mubr.f32.gmra.mrb[0].mxu0 %v1188
          %v1325 = vpop.f32.mrb[0].mxu0
          %v1326 = vadd.f32 %v1237, %v1325
          %v1327 = vpop.f32.mrb[0].mxu0
          %1328 = vmatprep.mubr.f32.mxu0 0.0
          %1329 = vmatmul.mubr.f32.gmra.mrb[0].mxu0 %v1189
          %v1330 = vpop.f32.mrb[0].mxu0
          %v1331 = vadd.f32 %v1237, %v1330
          %v1332 = vpop.f32.mrb[0].mxu0
          %1333 = vmatprep.mubr.f32.mxu0 0.0
          %1334 = vmatmul.mubr.f32.gmra.mrb[0].mxu0 %v1190
          %v1335 = vpop.f32.mrb[0].mxu0
          %v1336 = vadd.f32 %v1237, %v1335
          %v1337 = vpop.f32.mrb[0].mxu0
          %1338 = vmatprep.mubr.f32.mxu0 0.0
          %1339 = vmatmul.mubr.f32.gmra.mrb[0].mxu0 %v1191
          %v1340 = vpop.f32.mrb[0].mxu0
          %v1341 = vadd.f32 %v1237, %v1340
          %v1342 = vpop.f32.mrb[0].mxu0
          %1343 = vmatprep.mubr.f32.mxu0 0.0
          %1344 = vmatmul.mubr.f32.gmra.mrb[0].mxu0 %v1192
          %v1345 = vpop.f32.mrb[0].mxu0
          %v1346 = vadd.f32 %v1237, %v1345
          %v1347 = vpop.f32.mrb[0].mxu0
          %1348 = vmatprep.mubr.f32.mxu0 0.0
          %1349 = vmatmul.mubr.f32.gmra.mrb[0].mxu0 %v1193
          %v1350 = vpop.f32.mrb[0].mxu0
          %v1351 = vadd.f32 %v1237, %v1350
          %v1352 = vpop.f32.mrb[0].mxu0
          %1353 = vmatprep.mubr.f32.mxu0 0.0
          %1354 = vmatmul.mubr.f32.gmra.mrb[0].mxu0 %v1194
          %v1355 = vpop.f32.mrb[0].mxu0
          %v1356 = vadd.f32 %v1237, %v1355
          %v1357 = vpop.f32.mrb[0].mxu0
          %1358 = vmatprep.mubr.f32.mxu0 0.0
          %1359 = vmatmul.mubr.f32.gmra.mrb[0].mxu0 %v1195
          %v1360 = vpop.f32.mrb[0].mxu0
          %v1361 = vadd.f32 %v1237, %v1360
          %v1362 = vpop.f32.mrb[0].mxu0
          %1363 = vmatprep.mubr.f32.mxu0 0.0
          %1364 = vmatmul.mubr.f32.gmra.mrb[0].mxu0 %v1196
          %v1365 = vpop.f32.mrb[0].mxu0
          %v1366 = vadd.f32 %v1237, %v1365
          %v1367 = vpop.f32.mrb[0].mxu0
          %1368 = vmatprep.mubr.f32.mxu0 0.0
          %1369 = vmatmul.mubr.f32.gmra.mrb[0].mxu0 %v1197
          %v1370 = vpop.f32.mrb[0].mxu0
          %v1371 = vadd.f32 %v1237, %v1370
          %v1372 = vpop.f32.mrb[0].mxu0
          %1373 = vmatprep.mubr.f32.mxu0 0.0
          %1374 = vmatmul.mubr.f32.gmra.mrb[0].mxu0 %v1198
          %v1375 = vpop.f32.mrb[0].mxu0
          %v1376 = vadd.f32 %v1237, %v1375
          %v1377 = vpop.f32.mrb[0].mxu0
          %1378 = vmatprep.mubr.f32.mxu0 0.0
          %1379 = vmatmul.mubr.f32.gmra.mrb[0].mxu0 %v1199
          %v1380 = vpop.f32.mrb[0].mxu0
          %v1381 = vadd.f32 %v1237, %v1380
          %v1382 = vpop.f32.mrb[0].mxu0
          %1383 = vmatprep.mubr.f32.mxu0 0.0
          %1384 = vmatmul.mubr.f32.gmra.mrb[0].mxu0 %v1200
          %v1385 = vpop.f32.mrb[0].mxu0
          %v1386 = vadd.f32 %v1237, %v1385
          %v1387 = vpop.f32.mrb[0].mxu0
          %1388 = vmatprep.mubr.f32.mxu0 0.0
          %1389 = vmatmul.mubr.f32.gmra.mrb[0].mxu0 %v1201
          %v1390 = vpop.f32.mrb[0].mxu0
          %v1391 = vadd.f32 %v1237, %v1390
          %v1392 = vpop.f32.mrb[0].mxu0
          %1393 = vmatprep.mubr.f32.mxu0 0.0
          %1394 = vmatmul.mubr.f32.gmra.mrb[0].mxu0 %v1202
          %v1395 = vpop.f32.mrb[0].mxu0
          %v1396 = vadd.f32 %v1237, %v1395
          %v1397 = vpop.f32.mrb[0].mxu0
          %1398 = vmatprep.mubr.f32.mxu0 0.0
          %1399 = vmatmul.mubr.f32.gmra.mrb[0].mxu0 %v1203
          %v1400 = vpop.f32.mrb[0].mxu0
          %v1401 = vadd.f32 %v1237, %v1400
          %v1402 = vpop.f32.mrb[0].mxu0
          %1403 = vmatprep.mubr.f32.mxu0 0.0
          %1404 = vmatmul.mubr.f32.gmra.mrb[0].mxu0 %v1204
          %v1405 = vpop.f32.mrb[0].mxu0
          %v1406 = vadd.f32 %v1237, %v1405
          %v1407 = vpop.f32.mrb[0].mxu0
          %1408 = vmatprep.mubr.f32.mxu0 0.0
          %1409 = vmatmul.mubr.f32.gmra.mrb[0].mxu0 %v1205
          %v1410 = vpop.f32.mrb[0].mxu0
          %v1411 = vadd.f32 %v1237, %v1410
          %v1412 = vpop.f32.mrb[0].mxu0
          %1413 = vmatprep.mubr.f32.mxu0 0.0
          %1414 = vmatmul.mubr.f32.gmra.mrb[0].mxu0 %v1206
          %v1415 = vpop.f32.mrb[0].mxu0
          %v1416 = vadd.f32 %v1237, %v1415
          %v1417 = vpop.f32.mrb[0].mxu0
          %1418 = vmatprep.mubr.f32.mxu0 0.0
          %1419 = vmatmul.mubr.f32.gmra.mrb[0].mxu0 %v1207
          %v1420 = vpop.f32.mrb[0].mxu0
          %v1421 = vadd.f32 %v1237, %v1420
          %v1422 = vpop.f32.mrb[0].mxu0
          %1423 = vmatprep.mubr.f32.mxu0 0.0
          %1424 = vmatmul.mubr.f32.gmra.mrb[0].mxu0 %v1208
          %v1425 = vpop.f32.mrb[0].mxu0
          %v1426 = vadd.f32 %v1237, %v1425
          %v1427 = vpop.f32.mrb[0].mxu0
          %1428 = vmatprep.mubr.f32.mxu0 0.0
          %1429 = vmatmul.mubr.f32.gmra.mrb[0].mxu0 %v1209
          %v1430 = vpop.f32.mrb[0].mxu0
          %v1431 = vadd.f32 %v1237, %v1430
          %v1432 = vpop.f32.mrb[0].mxu0
          %1433 = vmatprep.mubr.f32.mxu0 0.0
          %1434 = vmatmul.mubr.f32.gmra.mrb[0].mxu0 %v1210
          %v1435 = vpop.f32.mrb[0].mxu0
          %v1436 = vadd.f32 %v1237, %v1435
          %v1437 = vpop.f32.mrb[0].mxu0
          %1438 = vmatprep.mubr.f32.mxu0 0.0
          %1439 = vmatmul.mubr.f32.gmra.mrb[0].mxu0 %v1211
          %v1440 = vpop.f32.mrb[0].mxu0
          %v1441 = vadd.f32 %v1237, %v1440
          %v1442 = vpop.f32.mrb[0].mxu0
          %1443 = vmatprep.mubr.f32.mxu0 0.0
          %1444 = vmatmul.mubr.f32.gmra.mrb[0].mxu0 %v1212
          %v1445 = vpop.f32.mrb[0].mxu0
          %v1446 = vadd.f32 %v1237, %v1445
          %v1447 = vpop.f32.mrb[0].mxu0
          %1448 = vmatprep.mubr.f32.mxu0 0.0
          %1449 = vmatmul.mubr.f32.gmra.mrb[0].mxu0 %v1213
          %v1450 = vpop.f32.mrb[0].mxu0
          %v1451 = vadd.f32 %v1237, %v1450
          %v1452 = vpop.f32.mrb[0].mxu0
          %1453 = vmatprep.mubr.f32.mxu0 0.0
          %1454 = vmatmul.mubr.f32.gmra.mrb[0].mxu0 %v1214
          %v1455 = vpop.f32.mrb[0].mxu0
          %v1456 = vadd.f32 %v1237, %v1455
          %v1457 = vpop.f32.mrb[0].mxu0
          %1458 = vmatprep.mubr.f32.mxu0 0.0
          %1459 = vmatmul.mubr.f32.gmra.mrb[0].mxu0 %v1215
          %v1460 = vpop.f32.mrb[0].mxu0
          %v1461 = vadd.f32 %v1237, %v1460
          %v1462 = vpop.f32.mrb[0].mxu0
          %1463 = vdwg.mxu0
          %v1464 = vmax.f32 %v1306, 0.0
          %v1465 = vmax.f32 %v1311, 0.0
          %v1466 = vmax.f32 %v1316, 0.0
          %v1467 = vmax.f32 %v1321, 0.0
          %v1468 = vmax.f32 %v1326, 0.0
          %v1469 = vmax.f32 %v1331, 0.0
          %v1470 = vmax.f32 %v1336, 0.0
          %v1471 = vmax.f32 %v1341, 0.0
          %v1472 = vmax.f32 %v1346, 0.0
          %v1473 = vmax.f32 %v1351, 0.0
          %v1474 = vmax.f32 %v1356, 0.0
          %v1475 = vmax.f32 %v1361, 0.0
          %v1476 = vmax.f32 %v1366, 0.0
          %v1477 = vmax.f32 %v1371, 0.0
          %v1478 = vmax.f32 %v1376, 0.0
          %v1479 = vmax.f32 %v1381, 0.0
          %v1480 = vmax.f32 %v1386, 0.0
          %v1481 = vmax.f32 %v1391, 0.0
          %v1482 = vmax.f32 %v1396, 0.0
          %v1483 = vmax.f32 %v1401, 0.0
          %v1484 = vmax.f32 %v1406, 0.0
          %v1485 = vmax.f32 %v1411, 0.0
          %v1486 = vmax.f32 %v1416, 0.0
          %v1487 = vmax.f32 %v1421, 0.0
          %v1488 = vmax.f32 %v1426, 0.0
          %v1489 = vmax.f32 %v1431, 0.0
          %v1490 = vmax.f32 %v1436, 0.0
          %v1491 = vmax.f32 %v1441, 0.0
          %v1492 = vmax.f32 %v1446, 0.0
          %v1493 = vmax.f32 %v1451, 0.0
          %v1494 = vmax.f32 %v1456, 0.0
          %v1495 = vmax.f32 %v1461, 0.0
          %v1496 = vld [vmem:[#allocation9] sm:$0xff]
          %v1497 = vld [vmem:[#allocation9 + $0x8] sm:$0xff]
          %v1498 = vld [vmem:[#allocation9 + $0x10] sm:$0xff]
          %v1499 = vld [vmem:[#allocation9 + $0x18] sm:$0xff]
          %v1500 = vld [vmem:[#allocation9 + $0x20] sm:$0xff]
          %v1501 = vld [vmem:[#allocation9 + $0x28] sm:$0xff]
          %v1502 = vld [vmem:[#allocation9 + $0x30] sm:$0xff]
          %v1503 = vld [vmem:[#allocation9 + $0x38] sm:$0xff]
          %v1504 = vld [vmem:[#allocation9 + $0x40] sm:$0xff]
          %v1505 = vld [vmem:[#allocation9 + $0x48] sm:$0xff]
          %v1506 = vld [vmem:[#allocation9 + $0x50] sm:$0xff]
          %v1507 = vld [vmem:[#allocation9 + $0x58] sm:$0xff]
          %v1508 = vld [vmem:[#allocation9 + $0x60] sm:$0xff]
          %v1509 = vld [vmem:[#allocation9 + $0x68] sm:$0xff]
          %v1510 = vld [vmem:[#allocation9 + $0x70] sm:$0xff]
          %v1511 = vld [vmem:[#allocation9 + $0x78] sm:$0xff]
          %v1512 = vld [vmem:[%s5] sm:$0x1]
          %v1514 = vlaneseq
          %v1515 = vshrl.u32 %v1514, 7
          %v1516 = vsub.s32 0, %v1515
          %v1517 = vrot.slane %v1512, %v1516
          %1519 = vmatprep.subr.mxu0 0.0
          %1520 = vmatpush1.msra.mxu0 %v1496
          %1521 = vmatprep.subr.mxu0 0.0
          %1522 = vmatpush1.msra.mxu0 %v1497
          %1523 = vmatprep.subr.mxu0 0.0
          %1524 = vmatpush1.msra.mxu0 %v1498
          %1525 = vmatprep.subr.mxu0 0.0
          %1526 = vmatpush1.msra.mxu0 %v1499
          %1527 = vmatprep.subr.mxu0 0.0
          %1528 = vmatpush1.msra.mxu0 %v1500
          %1529 = vmatprep.subr.mxu0 0.0
          %1530 = vmatpush1.msra.mxu0 %v1501
          %1531 = vmatprep.subr.mxu0 0.0
          %1532 = vmatpush1.msra.mxu0 %v1502
          %1533 = vmatprep.subr.mxu0 0.0
          %1534 = vmatpush1.msra.mxu0 %v1503
          %1535 = vmatprep.subr.mxu0 0.0
          %1536 = vmatpush1.msra.mxu0 %v1504
          %1537 = vmatprep.subr.mxu0 0.0
          %1538 = vmatpush1.msra.mxu0 %v1505
          %1539 = vmatprep.subr.mxu0 0.0
          %1540 = vmatpush1.msra.mxu0 %v1506
          %1541 = vmatprep.subr.mxu0 0.0
          %1542 = vmatpush1.msra.mxu0 %v1507
          %1543 = vmatprep.subr.mxu0 0.0
          %1544 = vmatpush1.msra.mxu0 %v1508
          %1545 = vmatprep.subr.mxu0 0.0
          %1546 = vmatpush1.msra.mxu0 %v1509
          %1547 = vmatprep.subr.mxu0 0.0
          %1548 = vmatpush1.msra.mxu0 %v1510
          %1549 = vmatprep.subr.mxu0 0.0
          %1550 = vmatpush1.msra.mxu0 %v1511
          %1551 = vmatprep.subr.mxu0 0.0
          %1552 = vmatpush1.msra.mxu0 0.0
          %1553 = vmatprep.subr.mxu0 0.0
          %1554 = vmatpush1.msra.mxu0 0.0
          %1555 = vmatprep.subr.mxu0 0.0
          %1556 = vmatpush1.msra.mxu0 0.0
          %1557 = vmatprep.subr.mxu0 0.0
          %1558 = vmatpush1.msra.mxu0 0.0
          %1559 = vmatprep.subr.mxu0 0.0
          %1560 = vmatpush1.msra.mxu0 0.0
          %1561 = vmatprep.subr.mxu0 0.0
          %1562 = vmatpush1.msra.mxu0 0.0
          %1563 = vmatprep.subr.mxu0 0.0
          %1564 = vmatpush1.msra.mxu0 0.0
          %1565 = vmatprep.subr.mxu0 0.0
          %1566 = vmatpush1.msra.mxu0 0.0
          %1567 = vmatprep.subr.mxu0 0.0
          %1568 = vmatpush1.msra.mxu0 0.0
          %1569 = vmatprep.subr.mxu0 0.0
          %1570 = vmatpush1.msra.mxu0 0.0
          %1571 = vmatprep.subr.mxu0 0.0
          %1572 = vmatpush1.msra.mxu0 0.0
          %1573 = vmatprep.subr.mxu0 0.0
          %1574 = vmatpush1.msra.mxu0 0.0
          %1575 = vmatprep.subr.mxu0 0.0
          %1576 = vmatpush1.msra.mxu0 0.0
          %1577 = vmatprep.subr.mxu0 0.0
          %1578 = vmatpush1.msra.mxu0 0.0
          %1579 = vmatprep.subr.mxu0 0.0
          %1580 = vmatpush1.msra.mxu0 0.0
          %1581 = vmatprep.subr.mxu0 0.0
          %1582 = vmatpush1.msra.mxu0 0.0
          %1583 = vmatprep.mubr.f32.mxu0 0.0
          %1584 = vmatmul.mubr.f32.gmra.mrb[0].mxu0 %v1464
          %v1585 = vpop.f32.mrb[0].mxu0
          %v1586 = vadd.f32 %v1517, %v1585
          %v1587 = vpop.f32.mrb[0].mxu0
          %1588 = vmatprep.mubr.f32.mxu0 0.0
          %1589 = vmatmul.mubr.f32.gmra.mrb[0].mxu0 %v1465
          %v1590 = vpop.f32.mrb[0].mxu0
          %v1591 = vadd.f32 %v1517, %v1590
          %v1592 = vpop.f32.mrb[0].mxu0
          %1593 = vmatprep.mubr.f32.mxu0 0.0
          %1594 = vmatmul.mubr.f32.gmra.mrb[0].mxu0 %v1466
          %v1595 = vpop.f32.mrb[0].mxu0
          %v1596 = vadd.f32 %v1517, %v1595
          %v1597 = vpop.f32.mrb[0].mxu0
          %1598 = vmatprep.mubr.f32.mxu0 0.0
          %1599 = vmatmul.mubr.f32.gmra.mrb[0].mxu0 %v1467
          %v1600 = vpop.f32.mrb[0].mxu0
          %v1601 = vadd.f32 %v1517, %v1600
          %v1602 = vpop.f32.mrb[0].mxu0
          %1603 = vmatprep.mubr.f32.mxu0 0.0
          %1604 = vmatmul.mubr.f32.gmra.mrb[0].mxu0 %v1468
          %v1605 = vpop.f32.mrb[0].mxu0
          %v1606 = vadd.f32 %v1517, %v1605
          %v1607 = vpop.f32.mrb[0].mxu0
          %1608 = vmatprep.mubr.f32.mxu0 0.0
          %1609 = vmatmul.mubr.f32.gmra.mrb[0].mxu0 %v1469
          %v1610 = vpop.f32.mrb[0].mxu0
          %v1611 = vadd.f32 %v1517, %v1610
          %v1612 = vpop.f32.mrb[0].mxu0
          %1613 = vmatprep.mubr.f32.mxu0 0.0
          %1614 = vmatmul.mubr.f32.gmra.mrb[0].mxu0 %v1470
          %v1615 = vpop.f32.mrb[0].mxu0
          %v1616 = vadd.f32 %v1517, %v1615
          %v1617 = vpop.f32.mrb[0].mxu0
          %1618 = vmatprep.mubr.f32.mxu0 0.0
          %1619 = vmatmul.mubr.f32.gmra.mrb[0].mxu0 %v1471
          %v1620 = vpop.f32.mrb[0].mxu0
          %v1621 = vadd.f32 %v1517, %v1620
          %v1622 = vpop.f32.mrb[0].mxu0
          %1623 = vmatprep.mubr.f32.mxu0 0.0
          %1624 = vmatmul.mubr.f32.gmra.mrb[0].mxu0 %v1472
          %v1625 = vpop.f32.mrb[0].mxu0
          %v1626 = vadd.f32 %v1517, %v1625
          %v1627 = vpop.f32.mrb[0].mxu0
          %1628 = vmatprep.mubr.f32.mxu0 0.0
          %1629 = vmatmul.mubr.f32.gmra.mrb[0].mxu0 %v1473
          %v1630 = vpop.f32.mrb[0].mxu0
          %v1631 = vadd.f32 %v1517, %v1630
          %v1632 = vpop.f32.mrb[0].mxu0
          %1633 = vmatprep.mubr.f32.mxu0 0.0
          %1634 = vmatmul.mubr.f32.gmra.mrb[0].mxu0 %v1474
          %v1635 = vpop.f32.mrb[0].mxu0
          %v1636 = vadd.f32 %v1517, %v1635
          %v1637 = vpop.f32.mrb[0].mxu0
          %1638 = vmatprep.mubr.f32.mxu0 0.0
          %1639 = vmatmul.mubr.f32.gmra.mrb[0].mxu0 %v1475
          %v1640 = vpop.f32.mrb[0].mxu0
          %v1641 = vadd.f32 %v1517, %v1640
          %v1642 = vpop.f32.mrb[0].mxu0
          %1643 = vmatprep.mubr.f32.mxu0 0.0
          %1644 = vmatmul.mubr.f32.gmra.mrb[0].mxu0 %v1476
          %v1645 = vpop.f32.mrb[0].mxu0
          %v1646 = vadd.f32 %v1517, %v1645
          %v1647 = vpop.f32.mrb[0].mxu0
          %1648 = vmatprep.mubr.f32.mxu0 0.0
          %1649 = vmatmul.mubr.f32.gmra.mrb[0].mxu0 %v1477
          %v1650 = vpop.f32.mrb[0].mxu0
          %v1651 = vadd.f32 %v1517, %v1650
          %v1652 = vpop.f32.mrb[0].mxu0
          %1653 = vmatprep.mubr.f32.mxu0 0.0
          %1654 = vmatmul.mubr.f32.gmra.mrb[0].mxu0 %v1478
          %v1655 = vpop.f32.mrb[0].mxu0
          %v1656 = vadd.f32 %v1517, %v1655
          %v1657 = vpop.f32.mrb[0].mxu0
          %1658 = vmatprep.mubr.f32.mxu0 0.0
          %1659 = vmatmul.mubr.f32.gmra.mrb[0].mxu0 %v1479
          %v1660 = vpop.f32.mrb[0].mxu0
          %v1661 = vadd.f32 %v1517, %v1660
          %v1662 = vpop.f32.mrb[0].mxu0
          %1663 = vmatprep.mubr.f32.mxu0 0.0
          %1664 = vmatmul.mubr.f32.gmra.mrb[0].mxu0 %v1480
          %v1665 = vpop.f32.mrb[0].mxu0
          %v1666 = vadd.f32 %v1517, %v1665
          %v1667 = vpop.f32.mrb[0].mxu0
          %1668 = vmatprep.mubr.f32.mxu0 0.0
          %1669 = vmatmul.mubr.f32.gmra.mrb[0].mxu0 %v1481
          %v1670 = vpop.f32.mrb[0].mxu0
          %v1671 = vadd.f32 %v1517, %v1670
          %v1672 = vpop.f32.mrb[0].mxu0
          %1673 = vmatprep.mubr.f32.mxu0 0.0
          %1674 = vmatmul.mubr.f32.gmra.mrb[0].mxu0 %v1482
          %v1675 = vpop.f32.mrb[0].mxu0
          %v1676 = vadd.f32 %v1517, %v1675
          %v1677 = vpop.f32.mrb[0].mxu0
          %1678 = vmatprep.mubr.f32.mxu0 0.0
          %1679 = vmatmul.mubr.f32.gmra.mrb[0].mxu0 %v1483
          %v1680 = vpop.f32.mrb[0].mxu0
          %v1681 = vadd.f32 %v1517, %v1680
          %v1682 = vpop.f32.mrb[0].mxu0
          %1683 = vmatprep.mubr.f32.mxu0 0.0
          %1684 = vmatmul.mubr.f32.gmra.mrb[0].mxu0 %v1484
          %v1685 = vpop.f32.mrb[0].mxu0
          %v1686 = vadd.f32 %v1517, %v1685
          %v1687 = vpop.f32.mrb[0].mxu0
          %1688 = vmatprep.mubr.f32.mxu0 0.0
          %1689 = vmatmul.mubr.f32.gmra.mrb[0].mxu0 %v1485
          %v1690 = vpop.f32.mrb[0].mxu0
          %v1691 = vadd.f32 %v1517, %v1690
          %v1692 = vpop.f32.mrb[0].mxu0
          %1693 = vmatprep.mubr.f32.mxu0 0.0
          %1694 = vmatmul.mubr.f32.gmra.mrb[0].mxu0 %v1486
          %v1695 = vpop.f32.mrb[0].mxu0
          %v1696 = vadd.f32 %v1517, %v1695
          %v1697 = vpop.f32.mrb[0].mxu0
          %1698 = vmatprep.mubr.f32.mxu0 0.0
          %1699 = vmatmul.mubr.f32.gmra.mrb[0].mxu0 %v1487
          %v1700 = vpop.f32.mrb[0].mxu0
          %v1701 = vadd.f32 %v1517, %v1700
          %v1702 = vpop.f32.mrb[0].mxu0
          %1703 = vmatprep.mubr.f32.mxu0 0.0
          %1704 = vmatmul.mubr.f32.gmra.mrb[0].mxu0 %v1488
          %v1705 = vpop.f32.mrb[0].mxu0
          %v1706 = vadd.f32 %v1517, %v1705
          %v1707 = vpop.f32.mrb[0].mxu0
          %1708 = vmatprep.mubr.f32.mxu0 0.0
          %1709 = vmatmul.mubr.f32.gmra.mrb[0].mxu0 %v1489
          %v1710 = vpop.f32.mrb[0].mxu0
          %v1711 = vadd.f32 %v1517, %v1710
          %v1712 = vpop.f32.mrb[0].mxu0
          %1713 = vmatprep.mubr.f32.mxu0 0.0
          %1714 = vmatmul.mubr.f32.gmra.mrb[0].mxu0 %v1490
          %v1715 = vpop.f32.mrb[0].mxu0
          %v1716 = vadd.f32 %v1517, %v1715
          %v1717 = vpop.f32.mrb[0].mxu0
          %1718 = vmatprep.mubr.f32.mxu0 0.0
          %1719 = vmatmul.mubr.f32.gmra.mrb[0].mxu0 %v1491
          %v1720 = vpop.f32.mrb[0].mxu0
          %v1721 = vadd.f32 %v1517, %v1720
          %v1722 = vpop.f32.mrb[0].mxu0
          %1723 = vmatprep.mubr.f32.mxu0 0.0
          %1724 = vmatmul.mubr.f32.gmra.mrb[0].mxu0 %v1492
          %v1725 = vpop.f32.mrb[0].mxu0
          %v1726 = vadd.f32 %v1517, %v1725
          %v1727 = vpop.f32.mrb[0].mxu0
          %1728 = vmatprep.mubr.f32.mxu0 0.0
          %1729 = vmatmul.mubr.f32.gmra.mrb[0].mxu0 %v1493
          %v1730 = vpop.f32.mrb[0].mxu0
          %v1731 = vadd.f32 %v1517, %v1730
          %v1732 = vpop.f32.mrb[0].mxu0
          %1733 = vmatprep.mubr.f32.mxu0 0.0
          %1734 = vmatmul.mubr.f32.gmra.mrb[0].mxu0 %v1494
          %v1735 = vpop.f32.mrb[0].mxu0
          %v1736 = vadd.f32 %v1517, %v1735
          %v1737 = vpop.f32.mrb[0].mxu0
          %1738 = vmatprep.mubr.f32.mxu0 0.0
          %1739 = vmatmul.mubr.f32.gmra.mrb[0].mxu0 %v1495
          %v1740 = vpop.f32.mrb[0].mxu0
          %v1741 = vadd.f32 %v1517, %v1740
          %v1742 = vpop.f32.mrb[0].mxu0
          %1743 = vdwg.mxu0
          %1744 = vst [vmem:[%s338] sm:$0xff] %v1586
          %1745 = vst [vmem:[%s338 + $0x8] sm:$0xff] %v1591
          %1746 = vst [vmem:[%s338 + $0x10] sm:$0xff] %v1596
          %1747 = vst [vmem:[%s338 + $0x18] sm:$0xff] %v1601
          %1748 = vst [vmem:[%s338 + $0x20] sm:$0xff] %v1606
          %1749 = vst [vmem:[%s338 + $0x28] sm:$0xff] %v1611
          %1750 = vst [vmem:[%s338 + $0x30] sm:$0xff] %v1616
          %1751 = vst [vmem:[%s338 + $0x38] sm:$0xff] %v1621
          %1752 = vst [vmem:[%s338 + $0x40] sm:$0xff] %v1626
          %1753 = vst [vmem:[%s338 + $0x48] sm:$0xff] %v1631
          %1754 = vst [vmem:[%s338 + $0x50] sm:$0xff] %v1636
          %1755 = vst [vmem:[%s338 + $0x58] sm:$0xff] %v1641
          %1756 = vst [vmem:[%s338 + $0x60] sm:$0xff] %v1646
          %1757 = vst [vmem:[%s338 + $0x68] sm:$0xff] %v1651
          %1758 = vst [vmem:[%s338 + $0x70] sm:$0xff] %v1656
          %1759 = vst [vmem:[%s338 + $0x78] sm:$0xff] %v1661
          %1760 = vst [vmem:[%s338 + $0x80] sm:$0xff] %v1666
          %1761 = vst [vmem:[%s338 + $0x88] sm:$0xff] %v1671
          %1762 = vst [vmem:[%s338 + $0x90] sm:$0xff] %v1676
          %1763 = vst [vmem:[%s338 + $0x98] sm:$0xff] %v1681
          %1764 = vst [vmem:[%s338 + $0xa0] sm:$0xff] %v1686
          %1765 = vst [vmem:[%s338 + $0xa8] sm:$0xff] %v1691
          %1766 = vst [vmem:[%s338 + $0xb0] sm:$0xff] %v1696
          %1767 = vst [vmem:[%s338 + $0xb8] sm:$0xff] %v1701
          %1768 = vst [vmem:[%s338 + $0xc0] sm:$0xff] %v1706
          %1769 = vst [vmem:[%s338 + $0xc8] sm:$0xff] %v1711
          %1770 = vst [vmem:[%s338 + $0xd0] sm:$0xff] %v1716
          %1771 = vst [vmem:[%s338 + $0xd8] sm:$0xff] %v1721
          %1772 = vst [vmem:[%s338 + $0xe0] sm:$0xff] %v1726
          %1773 = vst [vmem:[%s338 + $0xe8] sm:$0xff] %v1731
          %1774 = vst [vmem:[%s338 + $0xf0] sm:$0xff] %v1736
          %1775 = vst [vmem:[%s338 + $0xf8] sm:$0xff] %v1741
        $region68: #{tpu_custom_call.1} parent=43 // pred_fallthru
          _
        %s1776 = sand.u32 %s183, 1
        %s1777 = scalar_lea.sflag [#allocation5], %s1776
        %s1778 = sand.u32 %s183, 1
        %s1779 = smul.addr %s1778, 256
        %s1780 = scalar_lea.vmem [#allocation11], %s1779
        // Predicated region
        $region69: #{tpu_custom_call.1} parent=43 // pred_check
          %p1781 = pneg %p193
        $region70: #{tpu_custom_call.1} parent=43 // pred_check_branch
          %1783 = sbr.rel (%p1781) target = $region72
        $region71: #{tpu_custom_call.1} parent=43 // pred_region
          %s1784 = smul.u32 32, %s29
          %s1786 = ssub.s32 4096, 4096
          %1787 = vsyncadd %s1777, %s1786
          %s1788 = smul.addr %s1784, 128
          %s1789 = scalar_lea.hbm %s6, %s1788
          %s1790 = sshll.u32 %s1780, 4
          %s1791 = int_to_ptr.vmem [resolvable:$true] %s1790
          %1796 = dma.vmem_to_hbm [thread:$0]  %s1791, 4096, %s1789, %s1777, 128, 128, 8
        $region72: #{tpu_custom_call.1} parent=43 // pred_fallthru
          _
      $region44: #{tpu_custom_call.1} parent=5 // pred_fallthru
        _
      %p1797 = scmp.le.s32.totalorder 2, %s20
      // Predicated region
      $region73: #{tpu_custom_call.1} parent=5 // pred_check
        %p1798 = pneg %p1797
      $region74: #{tpu_custom_call.1} parent=5 // pred_check_branch
        %1800 = sbr.rel (%p1798) target = $region76
      $region75: #{tpu_custom_call.1} parent=5 // pred_region
        %s1801 = ssub.s32 %s20, 2
        // Predicated region
        $region77: #{tpu_custom_call.1} parent=75 // pred_check
          %p1802 = pneg %p199
        $region78: #{tpu_custom_call.1} parent=75 // pred_check_branch
          %1804 = sbr.rel (%p1802) target = $region80
        $region79: #{tpu_custom_call.1} parent=75 // pred_region
          %s1805 = sand.u32 %s184, 1
          %s1806 = scalar_lea.sflag [#allocation5], %s1805
          %s1807 = sand.u32 %s184, 1
          %s1808 = smul.addr %s1807, 256
          %s1809 = scalar_lea.vmem [#allocation11], %s1808
          %1810 = dma.done %s1806, 4096
        $region80: #{tpu_custom_call.1} parent=75 // pred_fallthru
          _
      $region76: #{tpu_custom_call.1} parent=5 // pred_fallthru
        _
    $region6: #{tpu_custom_call.1} parent=1 // loop_footer
      %s24 = sadd.s32 1, %s20
    $region7: #{tpu_custom_call.1} parent=1 // loop_footer_branch
      %19 = sbr.rel target = $region3
    $region8: #{tpu_custom_call.1} parent=1 // loop_exit
      _
    %1811 = vsyncpa [#allocation4], 1
    %s1812 = scalar_lea.sflag [#allocation4], 1
    %1813 = vsyncpa %s1812, 1
    %1814 = vsyncpa [#allocation7], 1
    %1815 = vsyncpa [#allocation10], 1
    %1816 = vsyncpa [#allocation5], 1
    %s1817 = scalar_lea.sflag [#allocation5], 1
    %1818 = vsyncpa %s1817, 1

</llo_original>
